<compile_context>
chip_gen: v5e
topology: v5e:2x2
jax: 0.10.0
libtpu: 0.0.40
codegen_flags: <defaults>
</compile_context>

<pallas_src>
import jax
import jax.numpy as jnp
from jax.experimental import pallas as pl
from jax.experimental.pallas import tpu as pltpu


def _fused_kernel(xpad_ref, w_ref, bias_ref, out_ref, acc_ref):
    # xpad_ref: (1, H+2, W+2, Cin)  bf16  full padded image (resident per-n)
    # w_ref:    (9, Cin, Ctot)      bf16  BN-scale-folded weights; tap k=ky*3+kx
    #                               holds the 3x3 weights in [:, C1:]; tap 4
    #                               (center) additionally holds the 1x1 weights
    #                               in [:, :C1] (zeros elsewhere).
    # bias_ref: (1, Ctot)           f32   folded BN bias (b1 ++ b2)
    # out_ref:  (1, TILE_H, W, Ctot)
    # acc_ref:  (TILE_H*W, Ctot)    f32   VMEM scratch accumulator
    tile_h = out_ref.shape[1]
    w_out = out_ref.shape[2]
    c_tot = out_ref.shape[3]
    cin = xpad_ref.shape[3]

    row0 = pl.multiple_of(pl.program_id(1) * tile_h, tile_h)

    for kx in range(3):
        # One kx-shifted slab per kx, read straight from the resident VMEM
        # block; the three ky taps are cheap leading-dim slices of it.
        slab = xpad_ref[0, pl.ds(row0, tile_h + 2), kx:kx + w_out, :]
        part = None
        for ky in range(3):
            tap = slab[ky:ky + tile_h].reshape(tile_h * w_out, cin)
            contrib = jnp.dot(tap, w_ref[ky * 3 + kx],
                              preferred_element_type=jnp.float32)
            part = contrib if part is None else part + contrib
        # Flush once per kx: 3 scratch RMWs per band instead of 9.
        if kx == 0:
            acc_ref[...] = part
        else:
            acc_ref[...] += part

    y = jnp.maximum(acc_ref[...] + bias_ref[...], 0.0)
    out_ref[0] = y.reshape(tile_h, w_out, c_tot).astype(out_ref.dtype)


def _fold_bn(gamma, beta, mean, var, eps=1e-3):
    scale = gamma / jnp.sqrt(var + eps)
    bias = beta - mean * scale
    return scale, bias


def _pick_tile_h(h, w, max_rows=512):
    """Largest divisor of h whose row band keeps tile_h*W <= max_rows."""
    best = 1
    for t in range(1, h + 1):
        if h % t == 0 and t * w <= max_rows:
            best = t
    return best


@jax.jit
def inception_forward(x_nchw, params):
    """x_nchw: (N, Cin, H, W) float32 -> (N, C1+C3, H, W) float32."""
    (w1, w3, g1, be1, m1, v1, g2, be2, m2, v2) = params
    C1 = w1.shape[0]
    C3 = w3.shape[0]
    Ctot = C1 + C3

    # NCHW -> NHWC
    x = jnp.transpose(x_nchw, (0, 2, 3, 1))
    N, H, W, Cin = x.shape
    # TODO(synk): wrapper-side pad/transpose are extra HBM passes; a fully fused
    # version would take the raw NCHW tensor and handle halo/layout in-kernel.
    xpad = jnp.pad(x, ((0, 0), (1, 1), (1, 1), (0, 0))).astype(jnp.bfloat16)

    s1, b1 = _fold_bn(g1, be1, m1, v1)
    s2, b2 = _fold_bn(g2, be2, m2, v2)

    # Fold BN scale into the conv weights; merge the 1x1 weights into the 3x3
    # center tap so the kernel keeps a single (TILE_H*W, Ctot) accumulator.
    w1_m = jnp.transpose(w1[:, :, 0, 0], (1, 0)) * s1[None, :]          # (Cin, C1)
    w3_m = jnp.transpose(w3, (2, 3, 1, 0)).reshape(9, Cin, C3) \
        * s2[None, None, :]                                             # (9, Cin, C3)
    w_comb = jnp.zeros((9, Cin, Ctot), jnp.float32)
    w_comb = w_comb.at[:, :, C1:].set(w3_m)
    w_comb = w_comb.at[4, :, :C1].set(w1_m)
    w_comb = w_comb.astype(jnp.bfloat16)

    bias = jnp.concatenate([b1, b2]).reshape(1, Ctot).astype(jnp.float32)

    tile_h = _pick_tile_h(H, W)

    out_nhwc = pl.pallas_call(
        _fused_kernel,
        out_shape=jax.ShapeDtypeStruct((N, H, W, Ctot), x_nchw.dtype),
        grid_spec=pltpu.PrefetchScalarGridSpec(
            num_scalar_prefetch=0,
            grid=(N, H // tile_h),
            in_specs=[
                # Padded image: index_map ignores the band axis -> the block
                # stays resident, re-DMA only when n changes.
                pl.BlockSpec((1, H + 2, W + 2, Cin), lambda n, h: (n, 0, 0, 0)),
                # Weights / bias: constant index -> resident across all steps.
                pl.BlockSpec((9, Cin, Ctot), lambda n, h: (0, 0, 0)),
                pl.BlockSpec((1, Ctot), lambda n, h: (0, 0)),
            ],
            out_specs=pl.BlockSpec((1, tile_h, W, Ctot),
                                   lambda n, h: (n, h, 0, 0)),
            scratch_shapes=[pltpu.VMEM((tile_h * W, Ctot), jnp.float32)],
        ),
        compiler_params=pltpu.CompilerParams(
            dimension_semantics=("parallel", "parallel")),
    )(xpad, w_comb, bias)

    # NHWC -> NCHW (matches torch.cat([branch1, branch2], dim=1))
    return jnp.transpose(out_nhwc, (0, 3, 1, 2))


def _reference_forward(x_nchw, params):
    """Pure-JAX f32 reference (lax conv) for correctness checking."""
    (w1, w3, g1, be1, m1, v1, g2, be2, m2, v2) = params
    dn = jax.lax.conv_dimension_numbers(x_nchw.shape, w1.shape,
                                        ("NCHW", "OIHW", "NCHW"))

    def conv_bn_relu(x, w, pad, g, be, m, v):
        y = jax.lax.conv_general_dilated(x, w, (1, 1),
                                         [(pad, pad), (pad, pad)],
                                         dimension_numbers=dn)
        s, b = _fold_bn(g, be, m, v)
        y = y * s[None, :, None, None] + b[None, :, None, None]
        return jnp.maximum(y, 0.0)

    y1 = conv_bn_relu(x_nchw, w1, 0, g1, be1, m1, v1)
    y2 = conv_bn_relu(x_nchw, w3, 1, g2, be2, m2, v2)
    return jnp.concatenate([y1, y2], axis=1)


def init_params(key, in_channels, ch1x1, ch3x3):
    ks = jax.random.split(key, 10)
    w1 = jax.random.normal(ks[0], (ch1x1, in_channels, 1, 1), jnp.float32) * 0.1
    w3 = jax.random.normal(ks[1], (ch3x3, in_channels, 3, 3), jnp.float32) * 0.1
    g1 = jax.random.uniform(ks[2], (ch1x1,), jnp.float32, 0.5, 1.5)
    be1 = jax.random.normal(ks[3], (ch1x1,), jnp.float32) * 0.1
    m1 = jax.random.normal(ks[4], (ch1x1,), jnp.float32) * 0.1
    v1 = jax.random.uniform(ks[5], (ch1x1,), jnp.float32, 0.5, 1.5)
    g2 = jax.random.uniform(ks[6], (ch3x3,), jnp.float32, 0.5, 1.5)
    be2 = jax.random.normal(ks[7], (ch3x3,), jnp.float32) * 0.1
    m2 = jax.random.normal(ks[8], (ch3x3,), jnp.float32) * 0.1
    v2 = jax.random.uniform(ks[9], (ch3x3,), jnp.float32, 0.5, 1.5)
    return (w1, w3, g1, be1, m1, v1, g2, be2, m2, v2)


if __name__ == "__main__":
    N, Cin, H, W = 2, 4, 16, 16
    ch1x1, ch3x3 = 8, 8

    key = jax.random.PRNGKey(0)
    k_x, k_p = jax.random.split(key)
    x = jax.random.normal(k_x, (N, Cin, H, W), jnp.float32)
    params = init_params(k_p, Cin, ch1x1, ch3x3)

    out = jax.block_until_ready(inception_forward(x, params))

    ref = _reference_forward(x, params)
    assert out.shape == (N, ch1x1 + ch3x3, H, W), out.shape
    # bf16 MXU inputs with f32 accumulation: tolerance loosened vs. the f32 ref.
    max_err = float(jnp.max(jnp.abs(out - ref)))
    assert jnp.allclose(out, ref, atol=3e-2, rtol=3e-2), max_err

    print("KERNEL_OK")
</pallas_src>

<mosaic_0001>
module attributes {stable_mosaic.version = 11 : i64} {
  func.func @_fused_kernel(%arg0: i32, %arg1: i32, %arg2: memref<1x18x18x4xbf16, #tpu.memory_space<vmem>>, %arg3: memref<9x4x16xbf16, #tpu.memory_space<vmem>>, %arg4: memref<1x16xf32, #tpu.memory_space<vmem>>, %arg5: memref<1x16x16x16xf32, #tpu.memory_space<vmem>>, %arg6: memref<256x16xf32, #tpu.memory_space<vmem>>) attributes {dimension_semantics = [#tpu.dimension_semantics<parallel>, #tpu.dimension_semantics<parallel>], iteration_bounds = array<i64: 2, 1>, scalar_prefetch = 0 : i64, scratch_operands = 1 : i64, tpu.core_type = #tpu.core_type<tc>, window_params = [{transform_indices = @transform_0, window_bounds = array<i64: 1, 18, 18, 4>}, {pipeline_mode = #tpu.pipeline_mode<synchronous>, transform_indices = @transform_1, window_bounds = array<i64: 9, 4, 16>}, {pipeline_mode = #tpu.pipeline_mode<synchronous>, transform_indices = @transform_2, window_bounds = array<i64: 1, 16>}, {transform_indices = @transform_3, window_bounds = array<i64: 1, 16, 16, 16>}]} {
    %c16_i32 = arith.constant 16 : i32
    %0 = arith.muli %arg1, %c16_i32 : i32
    %1 = tpu.assume_multiple %0, 16 : i32
    %c0 = arith.constant 0 : index
    %2 = arith.index_cast %1 : i32 to index
    %c0_0 = arith.constant 0 : index
    %c0_1 = arith.constant 0 : index
    %3 = vector.load %arg2[%c0, %2, %c0_0, %c0_1] : memref<1x18x18x4xbf16, #tpu.memory_space<vmem>>, vector<1x18x16x4xbf16>
    %4 = vector.shape_cast %3 : vector<1x18x16x4xbf16> to vector<18x16x4xbf16>
    %5 = vector.extract_strided_slice %4 {offsets = [0, 0, 0], sizes = [16, 16, 4], strides = [1, 1, 1]} : vector<18x16x4xbf16> to vector<16x16x4xbf16>
    %6 = vector.shape_cast %5 : vector<16x16x4xbf16> to vector<256x4xbf16>
    %c0_2 = arith.constant 0 : index
    %c0_3 = arith.constant 0 : index
    %c0_4 = arith.constant 0 : index
    %7 = vector.load %arg3[%c0_2, %c0_3, %c0_4] : memref<9x4x16xbf16, #tpu.memory_space<vmem>>, vector<1x4x16xbf16>
    %8 = vector.shape_cast %7 : vector<1x4x16xbf16> to vector<4x16xbf16>
    %cst = arith.constant dense<0.000000e+00> : vector<256x16xf32>
    %9 = tpu.matmul %6, %8, %cst {dimension_numbers = #tpu.dot_dimension_numbers<[1], [0], [0], [1], [0, 0, 1, 1], [], []>} : vector<256x4xbf16>, vector<4x16xbf16>, vector<256x16xf32> -> vector<256x16xf32>
    %10 = vector.extract_strided_slice %4 {offsets = [1, 0, 0], sizes = [16, 16, 4], strides = [1, 1, 1]} : vector<18x16x4xbf16> to vector<16x16x4xbf16>
    %11 = vector.shape_cast %10 : vector<16x16x4xbf16> to vector<256x4xbf16>
    %c3 = arith.constant 3 : index
    %c0_5 = arith.constant 0 : index
    %c0_6 = arith.constant 0 : index
    %12 = vector.load %arg3[%c3, %c0_5, %c0_6] : memref<9x4x16xbf16, #tpu.memory_space<vmem>>, vector<1x4x16xbf16>
    %13 = vector.shape_cast %12 : vector<1x4x16xbf16> to vector<4x16xbf16>
    %cst_7 = arith.constant dense<0.000000e+00> : vector<256x16xf32>
    %14 = tpu.matmul %11, %13, %cst_7 {dimension_numbers = #tpu.dot_dimension_numbers<[1], [0], [0], [1], [0, 0, 1, 1], [], []>} : vector<256x4xbf16>, vector<4x16xbf16>, vector<256x16xf32> -> vector<256x16xf32>
    %15 = arith.addf %9, %14 : vector<256x16xf32>
    %16 = vector.extract_strided_slice %4 {offsets = [2, 0, 0], sizes = [16, 16, 4], strides = [1, 1, 1]} : vector<18x16x4xbf16> to vector<16x16x4xbf16>
    %17 = vector.shape_cast %16 : vector<16x16x4xbf16> to vector<256x4xbf16>
    %c6 = arith.constant 6 : index
    %c0_8 = arith.constant 0 : index
    %c0_9 = arith.constant 0 : index
    %18 = vector.load %arg3[%c6, %c0_8, %c0_9] : memref<9x4x16xbf16, #tpu.memory_space<vmem>>, vector<1x4x16xbf16>
    %19 = vector.shape_cast %18 : vector<1x4x16xbf16> to vector<4x16xbf16>
    %cst_10 = arith.constant dense<0.000000e+00> : vector<256x16xf32>
    %20 = tpu.matmul %17, %19, %cst_10 {dimension_numbers = #tpu.dot_dimension_numbers<[1], [0], [0], [1], [0, 0, 1, 1], [], []>} : vector<256x4xbf16>, vector<4x16xbf16>, vector<256x16xf32> -> vector<256x16xf32>
    %21 = arith.addf %15, %20 : vector<256x16xf32>
    %c0_11 = arith.constant 0 : index
    %c0_12 = arith.constant 0 : index
    %22 = vector.load %arg6[%c0_11, %c0_12] : memref<256x16xf32, #tpu.memory_space<vmem>>, vector<256x16xf32>
    tpu.vector_store %arg6[%c0_11, %c0_12], %21 {strides = array<i32>} : memref<256x16xf32, #tpu.memory_space<vmem>>, vector<256x16xf32>,
    %c0_13 = arith.constant 0 : index
    %23 = arith.index_cast %1 : i32 to index
    %c1 = arith.constant 1 : index
    %c0_14 = arith.constant 0 : index
    %24 = vector.load %arg2[%c0_13, %23, %c1, %c0_14] : memref<1x18x18x4xbf16, #tpu.memory_space<vmem>>, vector<1x18x16x4xbf16>
    %25 = vector.shape_cast %24 : vector<1x18x16x4xbf16> to vector<18x16x4xbf16>
    %26 = vector.extract_strided_slice %25 {offsets = [0, 0, 0], sizes = [16, 16, 4], strides = [1, 1, 1]} : vector<18x16x4xbf16> to vector<16x16x4xbf16>
    %27 = vector.shape_cast %26 : vector<16x16x4xbf16> to vector<256x4xbf16>
    %c1_15 = arith.constant 1 : index
    %c0_16 = arith.constant 0 : index
    %c0_17 = arith.constant 0 : index
    %28 = vector.load %arg3[%c1_15, %c0_16, %c0_17] : memref<9x4x16xbf16, #tpu.memory_space<vmem>>, vector<1x4x16xbf16>
    %29 = vector.shape_cast %28 : vector<1x4x16xbf16> to vector<4x16xbf16>
    %cst_18 = arith.constant dense<0.000000e+00> : vector<256x16xf32>
    %30 = tpu.matmul %27, %29, %cst_18 {dimension_numbers = #tpu.dot_dimension_numbers<[1], [0], [0], [1], [0, 0, 1, 1], [], []>} : vector<256x4xbf16>, vector<4x16xbf16>, vector<256x16xf32> -> vector<256x16xf32>
    %31 = vector.extract_strided_slice %25 {offsets = [1, 0, 0], sizes = [16, 16, 4], strides = [1, 1, 1]} : vector<18x16x4xbf16> to vector<16x16x4xbf16>
    %32 = vector.shape_cast %31 : vector<16x16x4xbf16> to vector<256x4xbf16>
    %c4 = arith.constant 4 : index
    %c0_19 = arith.constant 0 : index
    %c0_20 = arith.constant 0 : index
    %33 = vector.load %arg3[%c4, %c0_19, %c0_20] : memref<9x4x16xbf16, #tpu.memory_space<vmem>>, vector<1x4x16xbf16>
    %34 = vector.shape_cast %33 : vector<1x4x16xbf16> to vector<4x16xbf16>
    %cst_21 = arith.constant dense<0.000000e+00> : vector<256x16xf32>
    %35 = tpu.matmul %32, %34, %cst_21 {dimension_numbers = #tpu.dot_dimension_numbers<[1], [0], [0], [1], [0, 0, 1, 1], [], []>} : vector<256x4xbf16>, vector<4x16xbf16>, vector<256x16xf32> -> vector<256x16xf32>
    %36 = arith.addf %30, %35 : vector<256x16xf32>
    %37 = vector.extract_strided_slice %25 {offsets = [2, 0, 0], sizes = [16, 16, 4], strides = [1, 1, 1]} : vector<18x16x4xbf16> to vector<16x16x4xbf16>
    %38 = vector.shape_cast %37 : vector<16x16x4xbf16> to vector<256x4xbf16>
    %c7 = arith.constant 7 : index
    %c0_22 = arith.constant 0 : index
    %c0_23 = arith.constant 0 : index
    %39 = vector.load %arg3[%c7, %c0_22, %c0_23] : memref<9x4x16xbf16, #tpu.memory_space<vmem>>, vector<1x4x16xbf16>
    %40 = vector.shape_cast %39 : vector<1x4x16xbf16> to vector<4x16xbf16>
    %cst_24 = arith.constant dense<0.000000e+00> : vector<256x16xf32>
    %41 = tpu.matmul %38, %40, %cst_24 {dimension_numbers = #tpu.dot_dimension_numbers<[1], [0], [0], [1], [0, 0, 1, 1], [], []>} : vector<256x4xbf16>, vector<4x16xbf16>, vector<256x16xf32> -> vector<256x16xf32>
    %42 = arith.addf %36, %41 : vector<256x16xf32>
    %c0_25 = arith.constant 0 : index
    %c0_26 = arith.constant 0 : index
    %43 = vector.load %arg6[%c0_25, %c0_26] : memref<256x16xf32, #tpu.memory_space<vmem>>, vector<256x16xf32>
    %44 = arith.addf %43, %42 : vector<256x16xf32>
    %c0_27 = arith.constant 0 : index
    %c0_28 = arith.constant 0 : index
    %45 = vector.load %arg6[%c0_27, %c0_28] : memref<256x16xf32, #tpu.memory_space<vmem>>, vector<256x16xf32>
    tpu.vector_store %arg6[%c0_27, %c0_28], %44 {strides = array<i32>} : memref<256x16xf32, #tpu.memory_space<vmem>>, vector<256x16xf32>,
    %c0_29 = arith.constant 0 : index
    %46 = arith.index_cast %1 : i32 to index
    %c2 = arith.constant 2 : index
    %c0_30 = arith.constant 0 : index
    %47 = vector.load %arg2[%c0_29, %46, %c2, %c0_30] : memref<1x18x18x4xbf16, #tpu.memory_space<vmem>>, vector<1x18x16x4xbf16>
    %48 = vector.shape_cast %47 : vector<1x18x16x4xbf16> to vector<18x16x4xbf16>
    %49 = vector.extract_strided_slice %48 {offsets = [0, 0, 0], sizes = [16, 16, 4], strides = [1, 1, 1]} : vector<18x16x4xbf16> to vector<16x16x4xbf16>
    %50 = vector.shape_cast %49 : vector<16x16x4xbf16> to vector<256x4xbf16>
    %c2_31 = arith.constant 2 : index
    %c0_32 = arith.constant 0 : index
    %c0_33 = arith.constant 0 : index
    %51 = vector.load %arg3[%c2_31, %c0_32, %c0_33] : memref<9x4x16xbf16, #tpu.memory_space<vmem>>, vector<1x4x16xbf16>
    %52 = vector.shape_cast %51 : vector<1x4x16xbf16> to vector<4x16xbf16>
    %cst_34 = arith.constant dense<0.000000e+00> : vector<256x16xf32>
    %53 = tpu.matmul %50, %52, %cst_34 {dimension_numbers = #tpu.dot_dimension_numbers<[1], [0], [0], [1], [0, 0, 1, 1], [], []>} : vector<256x4xbf16>, vector<4x16xbf16>, vector<256x16xf32> -> vector<256x16xf32>
    %54 = vector.extract_strided_slice %48 {offsets = [1, 0, 0], sizes = [16, 16, 4], strides = [1, 1, 1]} : vector<18x16x4xbf16> to vector<16x16x4xbf16>
    %55 = vector.shape_cast %54 : vector<16x16x4xbf16> to vector<256x4xbf16>
    %c5 = arith.constant 5 : index
    %c0_35 = arith.constant 0 : index
    %c0_36 = arith.constant 0 : index
    %56 = vector.load %arg3[%c5, %c0_35, %c0_36] : memref<9x4x16xbf16, #tpu.memory_space<vmem>>, vector<1x4x16xbf16>
    %57 = vector.shape_cast %56 : vector<1x4x16xbf16> to vector<4x16xbf16>
    %cst_37 = arith.constant dense<0.000000e+00> : vector<256x16xf32>
    %58 = tpu.matmul %55, %57, %cst_37 {dimension_numbers = #tpu.dot_dimension_numbers<[1], [0], [0], [1], [0, 0, 1, 1], [], []>} : vector<256x4xbf16>, vector<4x16xbf16>, vector<256x16xf32> -> vector<256x16xf32>
    %59 = arith.addf %53, %58 : vector<256x16xf32>
    %60 = vector.extract_strided_slice %48 {offsets = [2, 0, 0], sizes = [16, 16, 4], strides = [1, 1, 1]} : vector<18x16x4xbf16> to vector<16x16x4xbf16>
    %61 = vector.shape_cast %60 : vector<16x16x4xbf16> to vector<256x4xbf16>
    %c8 = arith.constant 8 : index
    %c0_38 = arith.constant 0 : index
    %c0_39 = arith.constant 0 : index
    %62 = vector.load %arg3[%c8, %c0_38, %c0_39] : memref<9x4x16xbf16, #tpu.memory_space<vmem>>, vector<1x4x16xbf16>
    %63 = vector.shape_cast %62 : vector<1x4x16xbf16> to vector<4x16xbf16>
    %cst_40 = arith.constant dense<0.000000e+00> : vector<256x16xf32>
    %64 = tpu.matmul %61, %63, %cst_40 {dimension_numbers = #tpu.dot_dimension_numbers<[1], [0], [0], [1], [0, 0, 1, 1], [], []>} : vector<256x4xbf16>, vector<4x16xbf16>, vector<256x16xf32> -> vector<256x16xf32>
    %65 = arith.addf %59, %64 : vector<256x16xf32>
    %c0_41 = arith.constant 0 : index
    %c0_42 = arith.constant 0 : index
    %66 = vector.load %arg6[%c0_41, %c0_42] : memref<256x16xf32, #tpu.memory_space<vmem>>, vector<256x16xf32>
    %67 = arith.addf %66, %65 : vector<256x16xf32>
    %c0_43 = arith.constant 0 : index
    %c0_44 = arith.constant 0 : index
    %68 = vector.load %arg6[%c0_43, %c0_44] : memref<256x16xf32, #tpu.memory_space<vmem>>, vector<256x16xf32>
    tpu.vector_store %arg6[%c0_43, %c0_44], %67 {strides = array<i32>} : memref<256x16xf32, #tpu.memory_space<vmem>>, vector<256x16xf32>,
    %c0_45 = arith.constant 0 : index
    %c0_46 = arith.constant 0 : index
    %69 = vector.load %arg6[%c0_45, %c0_46] : memref<256x16xf32, #tpu.memory_space<vmem>>, vector<256x16xf32>
    %c0_47 = arith.constant 0 : index
    %c0_48 = arith.constant 0 : index
    %70 = vector.load %arg4[%c0_47, %c0_48] : memref<1x16xf32, #tpu.memory_space<vmem>>, vector<1x16xf32>
    %71 = vector.broadcast %70 : vector<1x16xf32> to vector<256x16xf32>
    %72 = arith.addf %69, %71 : vector<256x16xf32>
    %cst_49 = arith.constant 0.000000e+00 : f32
    %73 = vector.broadcast %cst_49 : f32 to vector<256x16xf32>
    %74 = arith.maximumf %72, %73 : vector<256x16xf32>
    %75 = vector.shape_cast %74 : vector<256x16xf32> to vector<16x16x16xf32>
    %c0_50 = arith.constant 0 : index
    %c0_51 = arith.constant 0 : index
    %c0_52 = arith.constant 0 : index
    %c0_53 = arith.constant 0 : index
    %76 = vector.load %arg5[%c0_50, %c0_51, %c0_52, %c0_53] : memref<1x16x16x16xf32, #tpu.memory_space<vmem>>, vector<1x16x16x16xf32>
    %77 = vector.shape_cast %76 : vector<1x16x16x16xf32> to vector<16x16x16xf32>
    %78 = vector.shape_cast %75 : vector<16x16x16xf32> to vector<1x16x16x16xf32>
    tpu.vector_store %arg5[%c0_50, %c0_51, %c0_52, %c0_53], %78 {strides = array<i32>} : memref<1x16x16x16xf32, #tpu.memory_space<vmem>>, vector<1x16x16x16xf32>,
    return
  }
  func.func @transform_0(%arg0: i32, %arg1: i32) -> (i32, i32, i32, i32) {
    %c0_i32 = arith.constant 0 : i32
    %c0_i32_0 = arith.constant 0 : i32
    %c0_i32_1 = arith.constant 0 : i32
    %c0_i32_2 = arith.constant 0 : i32
    return %arg0, %c0_i32, %c0_i32_0, %c0_i32_1 : i32, i32, i32, i32
  }
  func.func @transform_1(%arg0: i32, %arg1: i32) -> (i32, i32, i32) {
    %c0_i32 = arith.constant 0 : i32
    %c0_i32_0 = arith.constant 0 : i32
    %c0_i32_1 = arith.constant 0 : i32
    %c0_i32_2 = arith.constant 0 : i32
    return %c0_i32, %c0_i32_0, %c0_i32_1 : i32, i32, i32
  }
  func.func @transform_2(%arg0: i32, %arg1: i32) -> (i32, i32) {
    %c0_i32 = arith.constant 0 : i32
    %c0_i32_0 = arith.constant 0 : i32
    %c0_i32_1 = arith.constant 0 : i32
    return %c0_i32, %c0_i32_0 : i32, i32
  }
  func.func @transform_3(%arg0: i32, %arg1: i32) -> (i32, i32, i32, i32) {
    %c0_i32 = arith.constant 0 : i32
    %c0_i32_0 = arith.constant 0 : i32
    %c0_i32_1 = arith.constant 0 : i32
    return %arg0, %arg1, %c0_i32, %c0_i32_0 : i32, i32, i32, i32
  }
}

</mosaic_0001>

<llo_original>
// kernel: inception_forward.1
$region0: #{inception_forward.1}
  #allocation0 [shape = 'u32[]', space=smem, size = 0x4, offset = 0x4, fixed_abs, tag = 'smem constant byte address 0x4 - core index']
  #allocation1 [shape = 'u32[72,128]{1,0:T(1,128)}', space=vmem, size = 0x9000, scoped, tag = 'internal scratch']
  #allocation2 [shape = 'f32[256,16]{1,0:T(8,128)}', space=vmem, size = 0x20000, scoped, tag = 'scratch operand']
  %s0 = inlined_call_operand.vmem [shape: bf16[2,18,18,4], index: 0, kind: input, shape index: {}]
  %s1 = inlined_call_operand.vmem [shape: bf16[9,4,16], index: 1, kind: input, shape index: {}]
  %s2 = inlined_call_operand.vmem [shape: f32[1,16], index: 2, kind: input, shape index: {}]
  %s3 = inlined_call_operand.vmem [shape: f32[2,16,16,16], index: 3, kind: output, shape index: {}]
  %s4 = sld [smem:[#allocation0]]
  $region45: #{inception_forward.1} parent=0
    _
  %s6 = ssub.s32 1, %s4
  %s7 = scalar_select 0, %s6, %s4
  loop: start=0, step=1, limit=4
  $region2: #{inception_forward.1} parent=0 // loop_pre_header
    _
  $region3: #{inception_forward.1} parent=0 // loop_header
    %s9 = sphi 0, %s13
    %p10 = scmp.ge.s32.totalorder %s9, 4
    %s16 = sphi 0, %s28
    %s17 = sphi 0, %s24
    %s18 = sphi 0, %s16
    %s19 = sphi 0, %s17
    %s20 = sphi 0, %s18
    %s21 = sphi 0, %s19
    %s31 = sphi 0, %s33
    %s34 = sphi 0, %s31
    %s35 = sphi 0, %s34
    %s51 = sphi 0, %s35
    %s55 = sphi 0, %s55
    %s57 = sphi 0, %s55
    %s58 = sphi 0, %s57
    %s72 = sphi 0, %s58
    %s76 = sphi 0, %s76
    %s78 = sphi 0, %s76
    %s79 = sphi 0, %s78
    %s93 = sphi 0, %s79
    %s101 = sphi 0, %s103
    %s104 = sphi 0, %s101
    %s105 = sphi 0, %s104
    %s121 = sphi 0, %s105
  $region4: #{inception_forward.1} parent=0 // loop_header_branch
    %12 = sbr.rel (%p10) target = $region8
  $region5: #{inception_forward.1} parent=0 // loop_body
    %s14 = ssub.s32 %s9, 1
    %s15 = ssub.s32 %s9, 2
    %s22 = sadd.s32 1, %s17
    %p23 = scmp.ge.s32.totalorder %s22, 1
    %s24 = scalar_select %p23, 0, %s22
    %s25 = sadd.s32 1, %s16
    %s26 = scalar_select %p23, %s25, %s16
    %p27 = scmp.ge.s32.totalorder %s26, 2
    %s28 = scalar_select %p27, 0, %s26
    %s29 = ssub.s32 %s16, %s28
    %p30 = scmp.eq.s32.totalorder %s29, 0
    %s32 = sadd.s32 %s31, 1
    %s33 = scalar_select %p30, %s31, %s32
    %p36 = pneg %p30
    %p37 = scmp.eq.s32.totalorder %s9, 1
    %p38 = por %p36, %p37
    %p39 = scmp.ne.s32.totalorder %s31, %s34
    %p40 = scmp.eq.s32.totalorder %s9, 0
    %p41 = por %p39, %p40
    %p42 = scmp.ne.s32.totalorder %s31, %s34
    %p43 = scmp.eq.s32.totalorder %s14, 1
    %p44 = por %p42, %p43
    %p45 = scmp.ne.s32.totalorder %s34, %s35
    %p46 = scmp.eq.s32.totalorder %s14, 0
    %p47 = por %p45, %p46
    %p48 = scmp.ne.s32.totalorder %s34, %s35
    %p49 = scmp.eq.s32.totalorder %s15, 1
    %p50 = por %p48, %p49
    %p52 = scmp.ne.s32.totalorder %s35, %s51
    %p53 = scmp.eq.s32.totalorder %s15, 0
    %p54 = por %p52, %p53
    %s56 = sadd.s32 %s55, 1
    %p59 = scmp.eq.s32.totalorder %s9, 1
    %p60 = scmp.ne.s32.totalorder %s55, %s57
    %p61 = scmp.eq.s32.totalorder %s9, 0
    %p62 = por %p60, %p61
    %p63 = scmp.ne.s32.totalorder %s55, %s57
    %p64 = scmp.eq.s32.totalorder %s14, 1
    %p65 = por %p63, %p64
    %p66 = scmp.ne.s32.totalorder %s57, %s58
    %p67 = scmp.eq.s32.totalorder %s14, 0
    %p68 = por %p66, %p67
    %p69 = scmp.ne.s32.totalorder %s57, %s58
    %p70 = scmp.eq.s32.totalorder %s15, 1
    %p71 = por %p69, %p70
    %p73 = scmp.ne.s32.totalorder %s58, %s72
    %p74 = scmp.eq.s32.totalorder %s15, 0
    %p75 = por %p73, %p74
    %s77 = sadd.s32 %s76, 1
    %p80 = scmp.eq.s32.totalorder %s9, 1
    %p81 = scmp.ne.s32.totalorder %s76, %s78
    %p82 = scmp.eq.s32.totalorder %s9, 0
    %p83 = por %p81, %p82
    %p84 = scmp.ne.s32.totalorder %s76, %s78
    %p85 = scmp.eq.s32.totalorder %s14, 1
    %p86 = por %p84, %p85
    %p87 = scmp.ne.s32.totalorder %s78, %s79
    %p88 = scmp.eq.s32.totalorder %s14, 0
    %p89 = por %p87, %p88
    %p90 = scmp.ne.s32.totalorder %s78, %s79
    %p91 = scmp.eq.s32.totalorder %s15, 1
    %p92 = por %p90, %p91
    %p94 = scmp.ne.s32.totalorder %s79, %s93
    %p95 = scmp.eq.s32.totalorder %s15, 0
    %p96 = por %p94, %p95
    %s97 = ssub.s32 %s16, %s28
    %s98 = ssub.s32 %s17, %s24
    %s99 = sor.u32 %s97, %s98
    %p100 = scmp.eq.s32.totalorder %s99, 0
    %s102 = sadd.s32 %s101, 1
    %s103 = scalar_select %p100, %s101, %s102
    %p106 = pneg %p100
    %p107 = scmp.eq.s32.totalorder %s9, 1
    %p108 = por %p106, %p107
    %p109 = scmp.ne.s32.totalorder %s101, %s104
    %p110 = scmp.eq.s32.totalorder %s9, 0
    %p111 = por %p109, %p110
    %p112 = scmp.ne.s32.totalorder %s101, %s104
    %p113 = scmp.eq.s32.totalorder %s14, 1
    %p114 = por %p112, %p113
    %p115 = scmp.ne.s32.totalorder %s104, %s105
    %p116 = scmp.eq.s32.totalorder %s14, 0
    %p117 = por %p115, %p116
    %p118 = scmp.ne.s32.totalorder %s104, %s105
    %p119 = scmp.eq.s32.totalorder %s15, 1
    %p120 = por %p118, %p119
    %p122 = scmp.ne.s32.totalorder %s105, %s121
    %p123 = scmp.eq.s32.totalorder %s15, 0
    %p124 = por %p122, %p123
    %p125 = scmp.le.s32.totalorder 1, %s9
    %p126 = scmp.lt.s32.totalorder %s9, 3
    %p127 = pnand %p125, %p126
    %p128 = pneg %p127
    // Predicated region
    $region9: #{inception_forward.1} parent=5 // pred_check
      _
    $region10: #{inception_forward.1} parent=5 // pred_check_branch
      %130 = sbr.rel (%p127) target = $region12
    $region11: #{inception_forward.1} parent=5 // pred_region
      %s131 = ssub.s32 %s9, 1
      // Predicated region
      $region13: #{inception_forward.1} parent=11 // pred_check
        %p132 = pneg %p68
      $region14: #{inception_forward.1} parent=11 // pred_check_branch
        %134 = sbr.rel (%p132) target = $region16
      $region15: #{inception_forward.1} parent=11 // pred_region
        _
      $region16: #{inception_forward.1} parent=11 // pred_fallthru
        _
      // Predicated region
      $region17: #{inception_forward.1} parent=11 // pred_check
        %p135 = pneg %p89
      $region18: #{inception_forward.1} parent=11 // pred_check_branch
        %137 = sbr.rel (%p135) target = $region20
      $region19: #{inception_forward.1} parent=11 // pred_region
        _
      $region20: #{inception_forward.1} parent=11 // pred_fallthru
        _
    $region12: #{inception_forward.1} parent=5 // pred_fallthru
      _
    %p138 = scmp.lt.s32.totalorder %s9, 2
    // Predicated region
    $region21: #{inception_forward.1} parent=5 // pred_check
      %p139 = pneg %p138
    $region22: #{inception_forward.1} parent=5 // pred_check_branch
      %141 = sbr.rel (%p139) target = $region24
    $region23: #{inception_forward.1} parent=5 // pred_region
      // Predicated region
      $region25: #{inception_forward.1} parent=23 // pred_check
        %p142 = pneg %p41
      $region26: #{inception_forward.1} parent=23 // pred_check_branch
        %144 = sbr.rel (%p142) target = $region28
      $region27: #{inception_forward.1} parent=23 // pred_region
        %p145 = scmp.lt.s32.totalorder %s16, 1
        %s146 = scalar_select %p145, %s16, 1
        %s147 = smul.addr %s146, 54
        %s148 = smul.addr %s147, 4
        %s149 = scalar_lea.vmem %s0, %s148
      $region28: #{inception_forward.1} parent=23 // pred_fallthru
        _
    $region24: #{inception_forward.1} parent=5 // pred_fallthru
      _
    %p150 = scmp.le.s32.totalorder 1, %s9
    %p151 = scmp.lt.s32.totalorder %s9, 3
    %p152 = pnand %p150, %p151
    %p153 = pneg %p152
    // Predicated region
    $region29: #{inception_forward.1} parent=5 // pred_check
      _
    $region30: #{inception_forward.1} parent=5 // pred_check_branch
      %155 = sbr.rel (%p152) target = $region32
    $region31: #{inception_forward.1} parent=5 // pred_region
      %s156 = ssub.s32 %s9, 1
      %p157 = scmp.lt.s32.totalorder %s18, 1
      %s158 = scalar_select %p157, %s18, 1
      %s159 = smul.addr %s158, 54
      %s160 = smul.addr %s159, 4
      %s161 = scalar_lea.vmem %s0, %s160
      %p162 = pneg %p47
      %p163 = pneg %p44
      %p164 = pneg %p68
      %p165 = pneg %p65
      %p166 = pneg %p89
      %p167 = pneg %p86
      %p168 = pneg %p117
      %p169 = pneg %p114
      %s170 = smul.u32 16, %s19
      %p171 = scmp.lt.s32.totalorder %s18, 1
      %s172 = scalar_select %p171, %s18, 1
      %p173 = scmp.lt.s32.totalorder %s170, 15
      %s174 = scalar_select %p173, %s170, 15
      %s175 = smul.addr %s174, 2
      %s176 = smul.addr %s172, 32
      %s177 = sadd.s32 %s175, %s176
      %s178 = smul.addr %s177, 8
      %s179 = scalar_lea.vmem %s3, %s178
      %p180 = scmp.lt.s32.totalorder %s18, 1
      %s181 = scalar_select %p180, %s18, 1
      %s182 = smul.addr %s181, 54
      %s183 = smul.addr %s182, 4
      %s184 = scalar_lea.vmem %s0, %s183
      %s185 = smul.u32 16, %s19
      %p186 = scmp.lt.s32.totalorder %s18, 1
      %s187 = scalar_select %p186, %s18, 1
      %p188 = scmp.lt.s32.totalorder %s185, 15
      %s189 = scalar_select %p188, %s185, 15
      %s190 = smul.addr %s189, 2
      %s191 = smul.addr %s187, 32
      %s192 = sadd.s32 %s190, %s191
      %s193 = smul.addr %s192, 8
      %s194 = scalar_lea.vmem %s3, %s193
      %s195 = smul.u32 16, %s19
      %s197 = smul.u32 %s19, 16
      %s198 = smul.u32 %s197, 3
      %s199 = smul.addr %s198, 4
      %s200 = scalar_lea.vmem %s184, %s199
      %v201 = vld [vmem:[%s200] sm:$0xf]
      %v202 = vld [vmem:[%s200 + $0x4] sm:$0xf]
      %v203 = vld [vmem:[%s200 + $0xc] sm:$0xf]
      %v204 = vld [vmem:[%s200 + $0x10] sm:$0xf]
      %v205 = vld [vmem:[%s200 + $0x18] sm:$0xf]
      %v206 = vld [vmem:[%s200 + $0x1c] sm:$0xf]
      %v207 = vld [vmem:[%s200 + $0x24] sm:$0xf]
      %v208 = vld [vmem:[%s200 + $0x28] sm:$0xf]
      %v209 = vld [vmem:[%s200 + $0x30] sm:$0xf]
      %v210 = vld [vmem:[%s200 + $0x34] sm:$0xf]
      %v211 = vld [vmem:[%s200 + $0x3c] sm:$0xf]
      %v212 = vld [vmem:[%s200 + $0x40] sm:$0xf]
      %v213 = vld [vmem:[%s200 + $0x48] sm:$0xf]
      %v214 = vld [vmem:[%s200 + $0x4c] sm:$0xf]
      %v215 = vld [vmem:[%s200 + $0x54] sm:$0xf]
      %v216 = vld [vmem:[%s200 + $0x58] sm:$0xf]
      %v217 = vld [vmem:[%s200 + $0x60] sm:$0xf]
      %v218 = vld [vmem:[%s200 + $0x64] sm:$0xf]
      %v219 = vld [vmem:[%s200 + $0x6c] sm:$0xf]
      %v220 = vld [vmem:[%s200 + $0x70] sm:$0xf]
      %v221 = vld [vmem:[%s200 + $0x78] sm:$0xf]
      %v222 = vld [vmem:[%s200 + $0x7c] sm:$0xf]
      %v223 = vld [vmem:[%s200 + $0x84] sm:$0xf]
      %v224 = vld [vmem:[%s200 + $0x88] sm:$0xf]
      %v225 = vld [vmem:[%s200 + $0x90] sm:$0xf]
      %v226 = vld [vmem:[%s200 + $0x94] sm:$0xf]
      %v227 = vld [vmem:[%s200 + $0x9c] sm:$0xf]
      %v228 = vld [vmem:[%s200 + $0xa0] sm:$0xf]
      %v229 = vld [vmem:[%s200 + $0xa8] sm:$0xf]
      %v230 = vld [vmem:[%s200 + $0xac] sm:$0xf]
      %v231 = vld [vmem:[%s200 + $0xb4] sm:$0xf]
      %v232 = vld [vmem:[%s200 + $0xb8] sm:$0xf]
      %v233 = vld [vmem:[%s200 + $0xc0] sm:$0xf]
      %v234 = vld [vmem:[%s200 + $0xc4] sm:$0xf]
      %v235 = vld [vmem:[%s200 + $0xcc] sm:$0xf]
      %v236 = vld [vmem:[%s200 + $0xd0] sm:$0xf]
      %v237 = vld [vmem:[%s1] sm:$0x3]
      %s238 = scalar_lea.vmem %s1, 6
      %v239 = vld [vmem:[%s238] sm:$0x3]
      %v272 = vunpack.c.l.b16 %v203
      %v273 = vunpack.c.l.b16 %v204
      %v274 = vunpack.c.l.b16 %v205
      %v275 = vunpack.c.l.b16 %v206
      %v276 = vunpack.c.l.b16 %v207
      %v277 = vunpack.c.l.b16 %v208
      %v278 = vunpack.c.l.b16 %v209
      %v279 = vunpack.c.l.b16 %v210
      %v280 = vunpack.c.l.b16 %v211
      %v281 = vunpack.c.l.b16 %v212
      %v282 = vunpack.c.l.b16 %v213
      %v283 = vunpack.c.l.b16 %v214
      %v284 = vunpack.c.l.b16 %v215
      %v285 = vunpack.c.l.b16 %v216
      %v286 = vunpack.c.l.b16 %v217
      %v287 = vunpack.c.l.b16 %v218
      %v288 = vunpack.c.l.b16 %v219
      %v289 = vunpack.c.l.b16 %v220
      %v290 = vunpack.c.l.b16 %v221
      %v291 = vunpack.c.l.b16 %v222
      %v292 = vunpack.c.l.b16 %v223
      %v293 = vunpack.c.l.b16 %v224
      %v294 = vunpack.c.l.b16 %v225
      %v295 = vunpack.c.l.b16 %v226
      %v296 = vunpack.c.l.b16 %v227
      %v297 = vunpack.c.l.b16 %v228
      %v298 = vunpack.c.l.b16 %v229
      %v299 = vunpack.c.l.b16 %v230
      %v300 = vunpack.c.l.b16 %v231
      %v301 = vunpack.c.l.b16 %v232
      %v302 = vunpack.c.l.b16 %v233
      %v303 = vunpack.c.l.b16 %v234
      %v304 = vpack.c.b16 %v273, %v272
      %v305 = vpack.c.b16 %v275, %v274
      %v306 = vpack.c.b16 %v277, %v276
      %v307 = vpack.c.b16 %v279, %v278
      %v308 = vpack.c.b16 %v281, %v280
      %v309 = vpack.c.b16 %v283, %v282
      %v310 = vpack.c.b16 %v285, %v284
      %v311 = vpack.c.b16 %v287, %v286
      %v312 = vpack.c.b16 %v289, %v288
      %v313 = vpack.c.b16 %v291, %v290
      %v314 = vpack.c.b16 %v293, %v292
      %v315 = vpack.c.b16 %v295, %v294
      %v316 = vpack.c.b16 %v297, %v296
      %v317 = vpack.c.b16 %v299, %v298
      %v318 = vpack.c.b16 %v301, %v300
      %v319 = vpack.c.b16 %v303, %v302
      %vm320 = vcmask 31744
      %v322 = vsel %vm320, %v304, 0
      %v325 = vsel %vm320, %v305, 0
      %v328 = vsel %vm320, %v306, 0
      %v331 = vsel %vm320, %v307, 0
      %v334 = vsel %vm320, %v308, 0
      %v337 = vsel %vm320, %v309, 0
      %v340 = vsel %vm320, %v310, 0
      %v343 = vsel %vm320, %v311, 0
      %v346 = vsel %vm320, %v312, 0
      %v349 = vsel %vm320, %v313, 0
      %v352 = vsel %vm320, %v314, 0
      %v355 = vsel %vm320, %v315, 0
      %v358 = vsel %vm320, %v316, 0
      %v361 = vsel %vm320, %v317, 0
      %v364 = vsel %vm320, %v318, 0
      %v367 = vsel %vm320, %v319, 0
      %vm369 = vcmask 1041408
      %v371 = vsel %vm369, %v239, 0
      %373 = vmatpush.bf16.msra.mxu0 0
      %374 = vmatpush.bf16.msra.mxu0 0
      %375 = vmatpush.bf16.msra.mxu0 0
      %376 = vmatpush.bf16.msra.mxu0 0
      %377 = vmatpush.bf16.msra.mxu0 0
      %378 = vmatpush.bf16.msra.mxu0 0
      %379 = vmatpush.bf16.msra.mxu0 0
      %380 = vmatpush.bf16.msra.mxu0 %v371
      %381 = vmatmul.bf16.gmra.mxu0 %v322
      %v382 = vpop.f32.mrf.mxu0
      %v383 = vadd.f32 0.0, %v382
      %v384 = vpop.f32.mrf.mxu0
      %v385 = vadd.f32 0.0, %v384
      %386 = vmatmul.bf16.gmra.mxu0 %v325
      %v387 = vpop.f32.mrf.mxu0
      %v388 = vadd.f32 0.0, %v387
      %v389 = vpop.f32.mrf.mxu0
      %v390 = vadd.f32 0.0, %v389
      %391 = vmatmul.bf16.gmra.mxu0 %v328
      %v392 = vpop.f32.mrf.mxu0
      %v393 = vadd.f32 0.0, %v392
      %v394 = vpop.f32.mrf.mxu0
      %v395 = vadd.f32 0.0, %v394
      %396 = vmatmul.bf16.gmra.mxu0 %v331
      %v397 = vpop.f32.mrf.mxu0
      %v398 = vadd.f32 0.0, %v397
      %v399 = vpop.f32.mrf.mxu0
      %v400 = vadd.f32 0.0, %v399
      %401 = vmatmul.bf16.gmra.mxu0 %v334
      %v402 = vpop.f32.mrf.mxu0
      %v403 = vadd.f32 0.0, %v402
      %v404 = vpop.f32.mrf.mxu0
      %v405 = vadd.f32 0.0, %v404
      %406 = vmatmul.bf16.gmra.mxu0 %v337
      %v407 = vpop.f32.mrf.mxu0
      %v408 = vadd.f32 0.0, %v407
      %v409 = vpop.f32.mrf.mxu0
      %v410 = vadd.f32 0.0, %v409
      %411 = vmatmul.bf16.gmra.mxu0 %v340
      %v412 = vpop.f32.mrf.mxu0
      %v413 = vadd.f32 0.0, %v412
      %v414 = vpop.f32.mrf.mxu0
      %v415 = vadd.f32 0.0, %v414
      %416 = vmatmul.bf16.gmra.mxu0 %v343
      %v417 = vpop.f32.mrf.mxu0
      %v418 = vadd.f32 0.0, %v417
      %v419 = vpop.f32.mrf.mxu0
      %v420 = vadd.f32 0.0, %v419
      %421 = vmatmul.bf16.gmra.mxu0 %v346
      %v422 = vpop.f32.mrf.mxu0
      %v423 = vadd.f32 0.0, %v422
      %v424 = vpop.f32.mrf.mxu0
      %v425 = vadd.f32 0.0, %v424
      %426 = vmatmul.bf16.gmra.mxu0 %v349
      %v427 = vpop.f32.mrf.mxu0
      %v428 = vadd.f32 0.0, %v427
      %v429 = vpop.f32.mrf.mxu0
      %v430 = vadd.f32 0.0, %v429
      %431 = vmatmul.bf16.gmra.mxu0 %v352
      %v432 = vpop.f32.mrf.mxu0
      %v433 = vadd.f32 0.0, %v432
      %v434 = vpop.f32.mrf.mxu0
      %v435 = vadd.f32 0.0, %v434
      %436 = vmatmul.bf16.gmra.mxu0 %v355
      %v437 = vpop.f32.mrf.mxu0
      %v438 = vadd.f32 0.0, %v437
      %v439 = vpop.f32.mrf.mxu0
      %v440 = vadd.f32 0.0, %v439
      %441 = vmatmul.bf16.gmra.mxu0 %v358
      %v442 = vpop.f32.mrf.mxu0
      %v443 = vadd.f32 0.0, %v442
      %v444 = vpop.f32.mrf.mxu0
      %v445 = vadd.f32 0.0, %v444
      %446 = vmatmul.bf16.gmra.mxu0 %v361
      %v447 = vpop.f32.mrf.mxu0
      %v448 = vadd.f32 0.0, %v447
      %v449 = vpop.f32.mrf.mxu0
      %v450 = vadd.f32 0.0, %v449
      %451 = vmatmul.bf16.gmra.mxu0 %v364
      %v452 = vpop.f32.mrf.mxu0
      %v453 = vadd.f32 0.0, %v452
      %v454 = vpop.f32.mrf.mxu0
      %v455 = vadd.f32 0.0, %v454
      %456 = vmatmul.bf16.gmra.mxu0 %v367
      %v457 = vpop.f32.mrf.mxu0
      %v458 = vadd.f32 0.0, %v457
      %v459 = vpop.f32.mrf.mxu0
      %v460 = vadd.f32 0.0, %v459
      %461 = vdwg.mxu0
      %v464 = vunpack.c.l.b16 %v201
      %v465 = vunpack.c.l.b16 %v202
      %v466 = vpack.c.b16 %v465, %v464
      %v468 = vsel %vm320, %v466, 0
      %v471 = vsel %vm369, %v237, 0
      %473 = vmatpush.bf16.msra.mxu0 0
      %474 = vmatpush.bf16.msra.mxu0 0
      %475 = vmatpush.bf16.msra.mxu0 0
      %476 = vmatpush.bf16.msra.mxu0 0
      %477 = vmatpush.bf16.msra.mxu0 0
      %478 = vmatpush.bf16.msra.mxu0 0
      %479 = vmatpush.bf16.msra.mxu0 0
      %480 = vmatpush.bf16.msra.mxu0 %v471
      %481 = vmatmul.bf16.gmra.mxu0 %v468
      %v482 = vpop.f32.mrf.mxu0
      %v483 = vadd.f32 %v383, %v482
      %v484 = vpop.f32.mrf.mxu0
      %v485 = vadd.f32 %v385, %v484
      %486 = vmatmul.bf16.gmra.mxu0 %v322
      %v487 = vpop.f32.mrf.mxu0
      %v488 = vadd.f32 %v388, %v487
      %v489 = vpop.f32.mrf.mxu0
      %v490 = vadd.f32 %v390, %v489
      %491 = vmatmul.bf16.gmra.mxu0 %v325
      %v492 = vpop.f32.mrf.mxu0
      %v493 = vadd.f32 %v393, %v492
      %v494 = vpop.f32.mrf.mxu0
      %v495 = vadd.f32 %v395, %v494
      %496 = vmatmul.bf16.gmra.mxu0 %v328
      %v497 = vpop.f32.mrf.mxu0
      %v498 = vadd.f32 %v398, %v497
      %v499 = vpop.f32.mrf.mxu0
      %v500 = vadd.f32 %v400, %v499
      %501 = vmatmul.bf16.gmra.mxu0 %v331
      %v502 = vpop.f32.mrf.mxu0
      %v503 = vadd.f32 %v403, %v502
      %v504 = vpop.f32.mrf.mxu0
      %v505 = vadd.f32 %v405, %v504
      %506 = vmatmul.bf16.gmra.mxu0 %v334
      %v507 = vpop.f32.mrf.mxu0
      %v508 = vadd.f32 %v408, %v507
      %v509 = vpop.f32.mrf.mxu0
      %v510 = vadd.f32 %v410, %v509
      %511 = vmatmul.bf16.gmra.mxu0 %v337
      %v512 = vpop.f32.mrf.mxu0
      %v513 = vadd.f32 %v413, %v512
      %v514 = vpop.f32.mrf.mxu0
      %v515 = vadd.f32 %v415, %v514
      %516 = vmatmul.bf16.gmra.mxu0 %v340
      %v517 = vpop.f32.mrf.mxu0
      %v518 = vadd.f32 %v418, %v517
      %v519 = vpop.f32.mrf.mxu0
      %v520 = vadd.f32 %v420, %v519
      %521 = vmatmul.bf16.gmra.mxu0 %v343
      %v522 = vpop.f32.mrf.mxu0
      %v523 = vadd.f32 %v423, %v522
      %v524 = vpop.f32.mrf.mxu0
      %v525 = vadd.f32 %v425, %v524
      %526 = vmatmul.bf16.gmra.mxu0 %v346
      %v527 = vpop.f32.mrf.mxu0
      %v528 = vadd.f32 %v428, %v527
      %v529 = vpop.f32.mrf.mxu0
      %v530 = vadd.f32 %v430, %v529
      %531 = vmatmul.bf16.gmra.mxu0 %v349
      %v532 = vpop.f32.mrf.mxu0
      %v533 = vadd.f32 %v433, %v532
      %v534 = vpop.f32.mrf.mxu0
      %v535 = vadd.f32 %v435, %v534
      %536 = vmatmul.bf16.gmra.mxu0 %v352
      %v537 = vpop.f32.mrf.mxu0
      %v538 = vadd.f32 %v438, %v537
      %v539 = vpop.f32.mrf.mxu0
      %v540 = vadd.f32 %v440, %v539
      %541 = vmatmul.bf16.gmra.mxu0 %v355
      %v542 = vpop.f32.mrf.mxu0
      %v543 = vadd.f32 %v443, %v542
      %v544 = vpop.f32.mrf.mxu0
      %v545 = vadd.f32 %v445, %v544
      %546 = vmatmul.bf16.gmra.mxu0 %v358
      %v547 = vpop.f32.mrf.mxu0
      %v548 = vadd.f32 %v448, %v547
      %v549 = vpop.f32.mrf.mxu0
      %v550 = vadd.f32 %v450, %v549
      %551 = vmatmul.bf16.gmra.mxu0 %v361
      %v552 = vpop.f32.mrf.mxu0
      %v553 = vadd.f32 %v453, %v552
      %v554 = vpop.f32.mrf.mxu0
      %v555 = vadd.f32 %v455, %v554
      %556 = vmatmul.bf16.gmra.mxu0 %v364
      %v557 = vpop.f32.mrf.mxu0
      %v558 = vadd.f32 %v458, %v557
      %v559 = vpop.f32.mrf.mxu0
      %v560 = vadd.f32 %v460, %v559
      %561 = vdwg.mxu0
      %s562 = scalar_lea.vmem %s1, 12
      %v563 = vld [vmem:[%s562] sm:$0x3]
      %v566 = vunpack.c.l.b16 %v235
      %v567 = vunpack.c.l.b16 %v236
      %v568 = vpack.c.b16 %v567, %v566
      %v570 = vsel %vm320, %v568, 0
      %v573 = vsel %vm369, %v563, 0
      %575 = vmatpush.bf16.msra.mxu0 0
      %576 = vmatpush.bf16.msra.mxu0 0
      %577 = vmatpush.bf16.msra.mxu0 0
      %578 = vmatpush.bf16.msra.mxu0 0
      %579 = vmatpush.bf16.msra.mxu0 0
      %580 = vmatpush.bf16.msra.mxu0 0
      %581 = vmatpush.bf16.msra.mxu0 0
      %582 = vmatpush.bf16.msra.mxu0 %v573
      %583 = vmatmul.bf16.gmra.mxu0 %v325
      %v584 = vpop.f32.mrf.mxu0
      %v585 = vadd.f32 0.0, %v584
      %v586 = vpop.f32.mrf.mxu0
      %v587 = vadd.f32 0.0, %v586
      %588 = vmatmul.bf16.gmra.mxu0 %v328
      %v589 = vpop.f32.mrf.mxu0
      %v590 = vadd.f32 0.0, %v589
      %v591 = vpop.f32.mrf.mxu0
      %v592 = vadd.f32 0.0, %v591
      %593 = vmatmul.bf16.gmra.mxu0 %v331
      %v594 = vpop.f32.mrf.mxu0
      %v595 = vadd.f32 0.0, %v594
      %v596 = vpop.f32.mrf.mxu0
      %v597 = vadd.f32 0.0, %v596
      %598 = vmatmul.bf16.gmra.mxu0 %v334
      %v599 = vpop.f32.mrf.mxu0
      %v600 = vadd.f32 0.0, %v599
      %v601 = vpop.f32.mrf.mxu0
      %v602 = vadd.f32 0.0, %v601
      %603 = vmatmul.bf16.gmra.mxu0 %v337
      %v604 = vpop.f32.mrf.mxu0
      %v605 = vadd.f32 0.0, %v604
      %v606 = vpop.f32.mrf.mxu0
      %v607 = vadd.f32 0.0, %v606
      %608 = vmatmul.bf16.gmra.mxu0 %v340
      %v609 = vpop.f32.mrf.mxu0
      %v610 = vadd.f32 0.0, %v609
      %v611 = vpop.f32.mrf.mxu0
      %v612 = vadd.f32 0.0, %v611
      %613 = vmatmul.bf16.gmra.mxu0 %v343
      %v614 = vpop.f32.mrf.mxu0
      %v615 = vadd.f32 0.0, %v614
      %v616 = vpop.f32.mrf.mxu0
      %v617 = vadd.f32 0.0, %v616
      %618 = vmatmul.bf16.gmra.mxu0 %v346
      %v619 = vpop.f32.mrf.mxu0
      %v620 = vadd.f32 0.0, %v619
      %v621 = vpop.f32.mrf.mxu0
      %v622 = vadd.f32 0.0, %v621
      %623 = vmatmul.bf16.gmra.mxu0 %v349
      %v624 = vpop.f32.mrf.mxu0
      %v625 = vadd.f32 0.0, %v624
      %v626 = vpop.f32.mrf.mxu0
      %v627 = vadd.f32 0.0, %v626
      %628 = vmatmul.bf16.gmra.mxu0 %v352
      %v629 = vpop.f32.mrf.mxu0
      %v630 = vadd.f32 0.0, %v629
      %v631 = vpop.f32.mrf.mxu0
      %v632 = vadd.f32 0.0, %v631
      %633 = vmatmul.bf16.gmra.mxu0 %v355
      %v634 = vpop.f32.mrf.mxu0
      %v635 = vadd.f32 0.0, %v634
      %v636 = vpop.f32.mrf.mxu0
      %v637 = vadd.f32 0.0, %v636
      %638 = vmatmul.bf16.gmra.mxu0 %v358
      %v639 = vpop.f32.mrf.mxu0
      %v640 = vadd.f32 0.0, %v639
      %v641 = vpop.f32.mrf.mxu0
      %v642 = vadd.f32 0.0, %v641
      %643 = vmatmul.bf16.gmra.mxu0 %v361
      %v644 = vpop.f32.mrf.mxu0
      %v645 = vadd.f32 0.0, %v644
      %v646 = vpop.f32.mrf.mxu0
      %v647 = vadd.f32 0.0, %v646
      %648 = vmatmul.bf16.gmra.mxu0 %v364
      %v649 = vpop.f32.mrf.mxu0
      %v650 = vadd.f32 0.0, %v649
      %v651 = vpop.f32.mrf.mxu0
      %v652 = vadd.f32 0.0, %v651
      %653 = vmatmul.bf16.gmra.mxu0 %v367
      %v654 = vpop.f32.mrf.mxu0
      %v655 = vadd.f32 0.0, %v654
      %v656 = vpop.f32.mrf.mxu0
      %v657 = vadd.f32 0.0, %v656
      %658 = vmatmul.bf16.gmra.mxu0 %v570
      %v659 = vpop.f32.mrf.mxu0
      %v660 = vadd.f32 0.0, %v659
      %v661 = vpop.f32.mrf.mxu0
      %v662 = vadd.f32 0.0, %v661
      %663 = vdwg.mxu0
      %v664 = vadd.f32 %v483, %v585
      %v665 = vadd.f32 %v485, %v587
      %v666 = vadd.f32 %v488, %v590
      %v667 = vadd.f32 %v490, %v592
      %v668 = vadd.f32 %v493, %v595
      %v669 = vadd.f32 %v495, %v597
      %v670 = vadd.f32 %v498, %v600
      %v671 = vadd.f32 %v500, %v602
      %v672 = vadd.f32 %v503, %v605
      %v673 = vadd.f32 %v505, %v607
      %v674 = vadd.f32 %v508, %v610
      %v675 = vadd.f32 %v510, %v612
      %v676 = vadd.f32 %v513, %v615
      %v677 = vadd.f32 %v515, %v617
      %v678 = vadd.f32 %v518, %v620
      %v679 = vadd.f32 %v520, %v622
      %v680 = vadd.f32 %v523, %v625
      %v681 = vadd.f32 %v525, %v627
      %v682 = vadd.f32 %v528, %v630
      %v683 = vadd.f32 %v530, %v632
      %v684 = vadd.f32 %v533, %v635
      %v685 = vadd.f32 %v535, %v637
      %v686 = vadd.f32 %v538, %v640
      %v687 = vadd.f32 %v540, %v642
      %v688 = vadd.f32 %v543, %v645
      %v689 = vadd.f32 %v545, %v647
      %v690 = vadd.f32 %v548, %v650
      %v691 = vadd.f32 %v550, %v652
      %v692 = vadd.f32 %v553, %v655
      %v693 = vadd.f32 %v555, %v657
      %v694 = vadd.f32 %v558, %v660
      %v695 = vadd.f32 %v560, %v662
      %vm696 = vcmask 130048
      %697 = vst.msk [vmem:[#allocation2] sm:$0xff] %vm696, %v664
      %698 = vst.msk [vmem:[#allocation2 + $0x8] sm:$0xff] %vm696, %v665
      %699 = vst.msk [vmem:[#allocation2 + $0x10] sm:$0xff] %vm696, %v666
      %700 = vst.msk [vmem:[#allocation2 + $0x18] sm:$0xff] %vm696, %v667
      %701 = vst.msk [vmem:[#allocation2 + $0x20] sm:$0xff] %vm696, %v668
      %702 = vst.msk [vmem:[#allocation2 + $0x28] sm:$0xff] %vm696, %v669
      %703 = vst.msk [vmem:[#allocation2 + $0x30] sm:$0xff] %vm696, %v670
      %704 = vst.msk [vmem:[#allocation2 + $0x38] sm:$0xff] %vm696, %v671
      %705 = vst.msk [vmem:[#allocation2 + $0x40] sm:$0xff] %vm696, %v672
      %706 = vst.msk [vmem:[#allocation2 + $0x48] sm:$0xff] %vm696, %v673
      %707 = vst.msk [vmem:[#allocation2 + $0x50] sm:$0xff] %vm696, %v674
      %708 = vst.msk [vmem:[#allocation2 + $0x58] sm:$0xff] %vm696, %v675
      %709 = vst.msk [vmem:[#allocation2 + $0x60] sm:$0xff] %vm696, %v676
      %710 = vst.msk [vmem:[#allocation2 + $0x68] sm:$0xff] %vm696, %v677
      %711 = vst.msk [vmem:[#allocation2 + $0x70] sm:$0xff] %vm696, %v678
      %712 = vst.msk [vmem:[#allocation2 + $0x78] sm:$0xff] %vm696, %v679
      %713 = vst.msk [vmem:[#allocation2 + $0x80] sm:$0xff] %vm696, %v680
      %714 = vst.msk [vmem:[#allocation2 + $0x88] sm:$0xff] %vm696, %v681
      %715 = vst.msk [vmem:[#allocation2 + $0x90] sm:$0xff] %vm696, %v682
      %716 = vst.msk [vmem:[#allocation2 + $0x98] sm:$0xff] %vm696, %v683
      %717 = vst.msk [vmem:[#allocation2 + $0xa0] sm:$0xff] %vm696, %v684
      %718 = vst.msk [vmem:[#allocation2 + $0xa8] sm:$0xff] %vm696, %v685
      %719 = vst.msk [vmem:[#allocation2 + $0xb0] sm:$0xff] %vm696, %v686
      %720 = vst.msk [vmem:[#allocation2 + $0xb8] sm:$0xff] %vm696, %v687
      %721 = vst.msk [vmem:[#allocation2 + $0xc0] sm:$0xff] %vm696, %v688
      %722 = vst.msk [vmem:[#allocation2 + $0xc8] sm:$0xff] %vm696, %v689
      %723 = vst.msk [vmem:[#allocation2 + $0xd0] sm:$0xff] %vm696, %v690
      %724 = vst.msk [vmem:[#allocation2 + $0xd8] sm:$0xff] %vm696, %v691
      %725 = vst.msk [vmem:[#allocation2 + $0xe0] sm:$0xff] %vm696, %v692
      %726 = vst.msk [vmem:[#allocation2 + $0xe8] sm:$0xff] %vm696, %v693
      %727 = vst.msk [vmem:[#allocation2 + $0xf0] sm:$0xff] %vm696, %v694
      %728 = vst.msk [vmem:[#allocation2 + $0xf8] sm:$0xff] %vm696, %v695
      %v729 = vld [vmem:[%s200] sm:$0xf]
      %v730 = vld [vmem:[%s200 + $0x4] sm:$0xf]
      %v731 = vld [vmem:[%s200 + $0x8] sm:$0x1]
      %v732 = vld [vmem:[%s200 + $0xc] sm:$0xf]
      %v733 = vld [vmem:[%s200 + $0x10] sm:$0xf]
      %v734 = vld [vmem:[%s200 + $0x14] sm:$0x1]
      %v735 = vld [vmem:[%s200 + $0x18] sm:$0xf]
      %v736 = vld [vmem:[%s200 + $0x1c] sm:$0xf]
      %v737 = vld [vmem:[%s200 + $0x20] sm:$0x1]
      %v738 = vld [vmem:[%s200 + $0x24] sm:$0xf]
      %v739 = vld [vmem:[%s200 + $0x28] sm:$0xf]
      %v740 = vld [vmem:[%s200 + $0x2c] sm:$0x1]
      %v741 = vld [vmem:[%s200 + $0x30] sm:$0xf]
      %v742 = vld [vmem:[%s200 + $0x34] sm:$0xf]
      %v743 = vld [vmem:[%s200 + $0x38] sm:$0x1]
      %v744 = vld [vmem:[%s200 + $0x3c] sm:$0xf]
      %v745 = vld [vmem:[%s200 + $0x40] sm:$0xf]
      %v746 = vld [vmem:[%s200 + $0x44] sm:$0x1]
      %v747 = vld [vmem:[%s200 + $0x48] sm:$0xf]
      %v748 = vld [vmem:[%s200 + $0x4c] sm:$0xf]
      %v749 = vld [vmem:[%s200 + $0x50] sm:$0x1]
      %v750 = vld [vmem:[%s200 + $0x54] sm:$0xf]
      %v751 = vld [vmem:[%s200 + $0x58] sm:$0xf]
      %v752 = vld [vmem:[%s200 + $0x5c] sm:$0x1]
      %v753 = vld [vmem:[%s200 + $0x60] sm:$0xf]
      %v754 = vld [vmem:[%s200 + $0x64] sm:$0xf]
      %v755 = vld [vmem:[%s200 + $0x68] sm:$0x1]
      %v756 = vld [vmem:[%s200 + $0x6c] sm:$0xf]
      %v757 = vld [vmem:[%s200 + $0x70] sm:$0xf]
      %v758 = vld [vmem:[%s200 + $0x74] sm:$0x1]
      %v759 = vld [vmem:[%s200 + $0x78] sm:$0xf]
      %v760 = vld [vmem:[%s200 + $0x7c] sm:$0xf]
      %v761 = vld [vmem:[%s200 + $0x80] sm:$0x1]
      %v762 = vld [vmem:[%s200 + $0x84] sm:$0xf]
      %v763 = vld [vmem:[%s200 + $0x88] sm:$0xf]
      %v764 = vld [vmem:[%s200 + $0x8c] sm:$0x1]
      %v765 = vld [vmem:[%s200 + $0x90] sm:$0xf]
      %v766 = vld [vmem:[%s200 + $0x94] sm:$0xf]
      %v767 = vld [vmem:[%s200 + $0x98] sm:$0x1]
      %v768 = vld [vmem:[%s200 + $0x9c] sm:$0xf]
      %v769 = vld [vmem:[%s200 + $0xa0] sm:$0xf]
      %v770 = vld [vmem:[%s200 + $0xa4] sm:$0x1]
      %v771 = vld [vmem:[%s200 + $0xa8] sm:$0xf]
      %v772 = vld [vmem:[%s200 + $0xac] sm:$0xf]
      %v773 = vld [vmem:[%s200 + $0xb0] sm:$0x1]
      %v774 = vld [vmem:[%s200 + $0xb4] sm:$0xf]
      %v775 = vld [vmem:[%s200 + $0xb8] sm:$0xf]
      %v776 = vld [vmem:[%s200 + $0xbc] sm:$0x1]
      %v777 = vld [vmem:[%s200 + $0xc0] sm:$0xf]
      %v778 = vld [vmem:[%s200 + $0xc4] sm:$0xf]
      %v779 = vld [vmem:[%s200 + $0xc8] sm:$0x1]
      %v780 = vld [vmem:[%s200 + $0xcc] sm:$0xf]
      %v781 = vld [vmem:[%s200 + $0xd0] sm:$0xf]
      %v782 = vld [vmem:[%s200 + $0xd4] sm:$0x1]
      %vm783 = vsmask.f32 3328
      %vm784 = vsmask.f32 7440
      %vm785 = vmor %vm783, %vm784
      %v787 = vshrl.u32 %v729, 16
      %v789 = vrot.slane %v787, 4
      %v790 = vshll.u32 %v729, 16
      %v792 = vrot.slane %v790, 5
      %v793 = vor.u32 %v789, %v792
      %v794 = vrot.slane %v793, 4
      %v796 = vshll.u32 %v730, 16
      %v798 = vrot.slane %v796, 5
      %v799 = vsel %vm785, %v794, %v798
      %v800 = vshrl.u32 %v730, 16
      %v802 = vrot.slane %v800, 4
      %v803 = vor.u32 %v802, %v798
      %v804 = vrot.slane %v803, 4
      %v806 = vshll.u32 %v731, 16
      %v808 = vrot.slane %v806, 5
      %v809 = vsel %vm785, %v804, %v808
      %v811 = vshrl.u32 %v732, 16
      %v813 = vrot.slane %v811, 4
      %v814 = vshll.u32 %v732, 16
      %v816 = vrot.slane %v814, 5
      %v817 = vor.u32 %v813, %v816
      %v818 = vrot.slane %v817, 4
      %v820 = vshll.u32 %v733, 16
      %v822 = vrot.slane %v820, 5
      %v823 = vsel %vm785, %v818, %v822
      %v824 = vshrl.u32 %v733, 16
      %v826 = vrot.slane %v824, 4
      %v827 = vor.u32 %v826, %v822
      %v828 = vrot.slane %v827, 4
      %v830 = vshll.u32 %v734, 16
      %v832 = vrot.slane %v830, 5
      %v833 = vsel %vm785, %v828, %v832
      %v835 = vshrl.u32 %v735, 16
      %v837 = vrot.slane %v835, 4
      %v838 = vshll.u32 %v735, 16
      %v840 = vrot.slane %v838, 5
      %v841 = vor.u32 %v837, %v840
      %v842 = vrot.slane %v841, 4
      %v844 = vshll.u32 %v736, 16
      %v846 = vrot.slane %v844, 5
      %v847 = vsel %vm785, %v842, %v846
      %v848 = vshrl.u32 %v736, 16
      %v850 = vrot.slane %v848, 4
      %v851 = vor.u32 %v850, %v846
      %v852 = vrot.slane %v851, 4
      %v854 = vshll.u32 %v737, 16
      %v856 = vrot.slane %v854, 5
      %v857 = vsel %vm785, %v852, %v856
      %v859 = vshrl.u32 %v738, 16
      %v861 = vrot.slane %v859, 4
      %v862 = vshll.u32 %v738, 16
      %v864 = vrot.slane %v862, 5
      %v865 = vor.u32 %v861, %v864
      %v866 = vrot.slane %v865, 4
      %v868 = vshll.u32 %v739, 16
      %v870 = vrot.slane %v868, 5
      %v871 = vsel %vm785, %v866, %v870
      %v872 = vshrl.u32 %v739, 16
      %v874 = vrot.slane %v872, 4
      %v875 = vor.u32 %v874, %v870
      %v876 = vrot.slane %v875, 4
      %v878 = vshll.u32 %v740, 16
      %v880 = vrot.slane %v878, 5
      %v881 = vsel %vm785, %v876, %v880
      %v883 = vshrl.u32 %v741, 16
      %v885 = vrot.slane %v883, 4
      %v886 = vshll.u32 %v741, 16
      %v888 = vrot.slane %v886, 5
      %v889 = vor.u32 %v885, %v888
      %v890 = vrot.slane %v889, 4
      %v892 = vshll.u32 %v742, 16
      %v894 = vrot.slane %v892, 5
      %v895 = vsel %vm785, %v890, %v894
      %v896 = vshrl.u32 %v742, 16
      %v898 = vrot.slane %v896, 4
      %v899 = vor.u32 %v898, %v894
      %v900 = vrot.slane %v899, 4
      %v902 = vshll.u32 %v743, 16
      %v904 = vrot.slane %v902, 5
      %v905 = vsel %vm785, %v900, %v904
      %v907 = vshrl.u32 %v744, 16
      %v909 = vrot.slane %v907, 4
      %v910 = vshll.u32 %v744, 16
      %v912 = vrot.slane %v910, 5
      %v913 = vor.u32 %v909, %v912
      %v914 = vrot.slane %v913, 4
      %v916 = vshll.u32 %v745, 16
      %v918 = vrot.slane %v916, 5
      %v919 = vsel %vm785, %v914, %v918
      %v920 = vshrl.u32 %v745, 16
      %v922 = vrot.slane %v920, 4
      %v923 = vor.u32 %v922, %v918
      %v924 = vrot.slane %v923, 4
      %v926 = vshll.u32 %v746, 16
      %v928 = vrot.slane %v926, 5
      %v929 = vsel %vm785, %v924, %v928
      %v931 = vshrl.u32 %v747, 16
      %v933 = vrot.slane %v931, 4
      %v934 = vshll.u32 %v747, 16
      %v936 = vrot.slane %v934, 5
      %v937 = vor.u32 %v933, %v936
      %v938 = vrot.slane %v937, 4
      %v940 = vshll.u32 %v748, 16
      %v942 = vrot.slane %v940, 5
      %v943 = vsel %vm785, %v938, %v942
      %v944 = vshrl.u32 %v748, 16
      %v946 = vrot.slane %v944, 4
      %v947 = vor.u32 %v946, %v942
      %v948 = vrot.slane %v947, 4
      %v950 = vshll.u32 %v749, 16
      %v952 = vrot.slane %v950, 5
      %v953 = vsel %vm785, %v948, %v952
      %v955 = vshrl.u32 %v750, 16
      %v957 = vrot.slane %v955, 4
      %v958 = vshll.u32 %v750, 16
      %v960 = vrot.slane %v958, 5
      %v961 = vor.u32 %v957, %v960
      %v962 = vrot.slane %v961, 4
      %v964 = vshll.u32 %v751, 16
      %v966 = vrot.slane %v964, 5
      %v967 = vsel %vm785, %v962, %v966
      %v968 = vshrl.u32 %v751, 16
      %v970 = vrot.slane %v968, 4
      %v971 = vor.u32 %v970, %v966
      %v972 = vrot.slane %v971, 4
      %v974 = vshll.u32 %v752, 16
      %v976 = vrot.slane %v974, 5
      %v977 = vsel %vm785, %v972, %v976
      %v979 = vshrl.u32 %v753, 16
      %v981 = vrot.slane %v979, 4
      %v982 = vshll.u32 %v753, 16
      %v984 = vrot.slane %v982, 5
      %v985 = vor.u32 %v981, %v984
      %v986 = vrot.slane %v985, 4
      %v988 = vshll.u32 %v754, 16
      %v990 = vrot.slane %v988, 5
      %v991 = vsel %vm785, %v986, %v990
      %v992 = vshrl.u32 %v754, 16
      %v994 = vrot.slane %v992, 4
      %v995 = vor.u32 %v994, %v990
      %v996 = vrot.slane %v995, 4
      %v998 = vshll.u32 %v755, 16
      %v1000 = vrot.slane %v998, 5
      %v1001 = vsel %vm785, %v996, %v1000
      %v1003 = vshrl.u32 %v756, 16
      %v1005 = vrot.slane %v1003, 4
      %v1006 = vshll.u32 %v756, 16
      %v1008 = vrot.slane %v1006, 5
      %v1009 = vor.u32 %v1005, %v1008
      %v1010 = vrot.slane %v1009, 4
      %v1012 = vshll.u32 %v757, 16
      %v1014 = vrot.slane %v1012, 5
      %v1015 = vsel %vm785, %v1010, %v1014
      %v1016 = vshrl.u32 %v757, 16
      %v1018 = vrot.slane %v1016, 4
      %v1019 = vor.u32 %v1018, %v1014
      %v1020 = vrot.slane %v1019, 4
      %v1022 = vshll.u32 %v758, 16
      %v1024 = vrot.slane %v1022, 5
      %v1025 = vsel %vm785, %v1020, %v1024
      %v1027 = vshrl.u32 %v759, 16
      %v1029 = vrot.slane %v1027, 4
      %v1030 = vshll.u32 %v759, 16
      %v1032 = vrot.slane %v1030, 5
      %v1033 = vor.u32 %v1029, %v1032
      %v1034 = vrot.slane %v1033, 4
      %v1036 = vshll.u32 %v760, 16
      %v1038 = vrot.slane %v1036, 5
      %v1039 = vsel %vm785, %v1034, %v1038
      %v1040 = vshrl.u32 %v760, 16
      %v1042 = vrot.slane %v1040, 4
      %v1043 = vor.u32 %v1042, %v1038
      %v1044 = vrot.slane %v1043, 4
      %v1046 = vshll.u32 %v761, 16
      %v1048 = vrot.slane %v1046, 5
      %v1049 = vsel %vm785, %v1044, %v1048
      %v1051 = vshrl.u32 %v762, 16
      %v1053 = vrot.slane %v1051, 4
      %v1054 = vshll.u32 %v762, 16
      %v1056 = vrot.slane %v1054, 5
      %v1057 = vor.u32 %v1053, %v1056
      %v1058 = vrot.slane %v1057, 4
      %v1060 = vshll.u32 %v763, 16
      %v1062 = vrot.slane %v1060, 5
      %v1063 = vsel %vm785, %v1058, %v1062
      %v1064 = vshrl.u32 %v763, 16
      %v1066 = vrot.slane %v1064, 4
      %v1067 = vor.u32 %v1066, %v1062
      %v1068 = vrot.slane %v1067, 4
      %v1070 = vshll.u32 %v764, 16
      %v1072 = vrot.slane %v1070, 5
      %v1073 = vsel %vm785, %v1068, %v1072
      %v1075 = vshrl.u32 %v765, 16
      %v1077 = vrot.slane %v1075, 4
      %v1078 = vshll.u32 %v765, 16
      %v1080 = vrot.slane %v1078, 5
      %v1081 = vor.u32 %v1077, %v1080
      %v1082 = vrot.slane %v1081, 4
      %v1084 = vshll.u32 %v766, 16
      %v1086 = vrot.slane %v1084, 5
      %v1087 = vsel %vm785, %v1082, %v1086
      %v1088 = vshrl.u32 %v766, 16
      %v1090 = vrot.slane %v1088, 4
      %v1091 = vor.u32 %v1090, %v1086
      %v1092 = vrot.slane %v1091, 4
      %v1094 = vshll.u32 %v767, 16
      %v1096 = vrot.slane %v1094, 5
      %v1097 = vsel %vm785, %v1092, %v1096
      %v1099 = vshrl.u32 %v768, 16
      %v1101 = vrot.slane %v1099, 4
      %v1102 = vshll.u32 %v768, 16
      %v1104 = vrot.slane %v1102, 5
      %v1105 = vor.u32 %v1101, %v1104
      %v1106 = vrot.slane %v1105, 4
      %v1108 = vshll.u32 %v769, 16
      %v1110 = vrot.slane %v1108, 5
      %v1111 = vsel %vm785, %v1106, %v1110
      %v1112 = vshrl.u32 %v769, 16
      %v1114 = vrot.slane %v1112, 4
      %v1115 = vor.u32 %v1114, %v1110
      %v1116 = vrot.slane %v1115, 4
      %v1118 = vshll.u32 %v770, 16
      %v1120 = vrot.slane %v1118, 5
      %v1121 = vsel %vm785, %v1116, %v1120
      %v1123 = vshrl.u32 %v771, 16
      %v1125 = vrot.slane %v1123, 4
      %v1126 = vshll.u32 %v771, 16
      %v1128 = vrot.slane %v1126, 5
      %v1129 = vor.u32 %v1125, %v1128
      %v1130 = vrot.slane %v1129, 4
      %v1132 = vshll.u32 %v772, 16
      %v1134 = vrot.slane %v1132, 5
      %v1135 = vsel %vm785, %v1130, %v1134
      %v1136 = vshrl.u32 %v772, 16
      %v1138 = vrot.slane %v1136, 4
      %v1139 = vor.u32 %v1138, %v1134
      %v1140 = vrot.slane %v1139, 4
      %v1142 = vshll.u32 %v773, 16
      %v1144 = vrot.slane %v1142, 5
      %v1145 = vsel %vm785, %v1140, %v1144
      %v1147 = vshrl.u32 %v774, 16
      %v1149 = vrot.slane %v1147, 4
      %v1150 = vshll.u32 %v774, 16
      %v1152 = vrot.slane %v1150, 5
      %v1153 = vor.u32 %v1149, %v1152
      %v1154 = vrot.slane %v1153, 4
      %v1156 = vshll.u32 %v775, 16
      %v1158 = vrot.slane %v1156, 5
      %v1159 = vsel %vm785, %v1154, %v1158
      %v1160 = vshrl.u32 %v775, 16
      %v1162 = vrot.slane %v1160, 4
      %v1163 = vor.u32 %v1162, %v1158
      %v1164 = vrot.slane %v1163, 4
      %v1166 = vshll.u32 %v776, 16
      %v1168 = vrot.slane %v1166, 5
      %v1169 = vsel %vm785, %v1164, %v1168
      %s1170 = scalar_lea.vmem %s1, 2
      %v1171 = vld [vmem:[%s1170] sm:$0x3]
      %v1173 = vshrl.u32 %v777, 16
      %v1175 = vrot.slane %v1173, 4
      %v1176 = vshll.u32 %v777, 16
      %v1178 = vrot.slane %v1176, 5
      %v1179 = vor.u32 %v1175, %v1178
      %v1180 = vrot.slane %v1179, 4
      %v1182 = vshll.u32 %v778, 16
      %v1184 = vrot.slane %v1182, 5
      %v1185 = vsel %vm785, %v1180, %v1184
      %v1186 = vshrl.u32 %v778, 16
      %v1188 = vrot.slane %v1186, 4
      %v1189 = vor.u32 %v1188, %v1184
      %v1190 = vrot.slane %v1189, 4
      %v1192 = vshll.u32 %v779, 16
      %v1194 = vrot.slane %v1192, 5
      %v1195 = vsel %vm785, %v1190, %v1194
      %s1196 = scalar_lea.vmem %s1, 8
      %v1197 = vld [vmem:[%s1196] sm:$0x3]
      %v1198 = vunpack.c.l.b16 %v823
      %v1199 = vunpack.c.l.b16 %v833
      %v1200 = vunpack.c.l.b16 %v847
      %v1201 = vunpack.c.l.b16 %v857
      %v1202 = vunpack.c.l.b16 %v871
      %v1203 = vunpack.c.l.b16 %v881
      %v1204 = vunpack.c.l.b16 %v895
      %v1205 = vunpack.c.l.b16 %v905
      %v1206 = vunpack.c.l.b16 %v919
      %v1207 = vunpack.c.l.b16 %v929
      %v1208 = vunpack.c.l.b16 %v943
      %v1209 = vunpack.c.l.b16 %v953
      %v1210 = vunpack.c.l.b16 %v967
      %v1211 = vunpack.c.l.b16 %v977
      %v1212 = vunpack.c.l.b16 %v991
      %v1213 = vunpack.c.l.b16 %v1001
      %v1214 = vunpack.c.l.b16 %v1015
      %v1215 = vunpack.c.l.b16 %v1025
      %v1216 = vunpack.c.l.b16 %v1039
      %v1217 = vunpack.c.l.b16 %v1049
      %v1218 = vunpack.c.l.b16 %v1063
      %v1219 = vunpack.c.l.b16 %v1073
      %v1220 = vunpack.c.l.b16 %v1087
      %v1221 = vunpack.c.l.b16 %v1097
      %v1222 = vunpack.c.l.b16 %v1111
      %v1223 = vunpack.c.l.b16 %v1121
      %v1224 = vunpack.c.l.b16 %v1135
      %v1225 = vunpack.c.l.b16 %v1145
      %v1226 = vunpack.c.l.b16 %v1159
      %v1227 = vunpack.c.l.b16 %v1169
      %v1228 = vunpack.c.l.b16 %v1185
      %v1229 = vunpack.c.l.b16 %v1195
      %v1230 = vpack.c.b16 %v1199, %v1198
      %v1231 = vpack.c.b16 %v1201, %v1200
      %v1232 = vpack.c.b16 %v1203, %v1202
      %v1233 = vpack.c.b16 %v1205, %v1204
      %v1234 = vpack.c.b16 %v1207, %v1206
      %v1235 = vpack.c.b16 %v1209, %v1208
      %v1236 = vpack.c.b16 %v1211, %v1210
      %v1237 = vpack.c.b16 %v1213, %v1212
      %v1238 = vpack.c.b16 %v1215, %v1214
      %v1239 = vpack.c.b16 %v1217, %v1216
      %v1240 = vpack.c.b16 %v1219, %v1218
      %v1241 = vpack.c.b16 %v1221, %v1220
      %v1242 = vpack.c.b16 %v1223, %v1222
      %v1243 = vpack.c.b16 %v1225, %v1224
      %v1244 = vpack.c.b16 %v1227, %v1226
      %v1245 = vpack.c.b16 %v1229, %v1228
      %v1247 = vsel %vm320, %v1230, 0
      %v1250 = vsel %vm320, %v1231, 0
      %v1253 = vsel %vm320, %v1232, 0
      %v1256 = vsel %vm320, %v1233, 0
      %v1259 = vsel %vm320, %v1234, 0
      %v1262 = vsel %vm320, %v1235, 0
      %v1265 = vsel %vm320, %v1236, 0
      %v1268 = vsel %vm320, %v1237, 0
      %v1271 = vsel %vm320, %v1238, 0
      %v1274 = vsel %vm320, %v1239, 0
      %v1277 = vsel %vm320, %v1240, 0
      %v1280 = vsel %vm320, %v1241, 0
      %v1283 = vsel %vm320, %v1242, 0
      %v1286 = vsel %vm320, %v1243, 0
      %v1289 = vsel %vm320, %v1244, 0
      %v1292 = vsel %vm320, %v1245, 0
      %v1295 = vsel %vm369, %v1197, 0
      %1297 = vmatpush.bf16.msra.mxu0 0
      %1298 = vmatpush.bf16.msra.mxu0 0
      %1299 = vmatpush.bf16.msra.mxu0 0
      %1300 = vmatpush.bf16.msra.mxu0 0
      %1301 = vmatpush.bf16.msra.mxu0 0
      %1302 = vmatpush.bf16.msra.mxu0 0
      %1303 = vmatpush.bf16.msra.mxu0 0
      %1304 = vmatpush.bf16.msra.mxu0 %v1295
      %1305 = vmatmul.bf16.gmra.mxu0 %v1247
      %v1306 = vpop.f32.mrf.mxu0
      %v1307 = vadd.f32 0.0, %v1306
      %v1308 = vpop.f32.mrf.mxu0
      %v1309 = vadd.f32 0.0, %v1308
      %1310 = vmatmul.bf16.gmra.mxu0 %v1250
      %v1311 = vpop.f32.mrf.mxu0
      %v1312 = vadd.f32 0.0, %v1311
      %v1313 = vpop.f32.mrf.mxu0
      %v1314 = vadd.f32 0.0, %v1313
      %1315 = vmatmul.bf16.gmra.mxu0 %v1253
      %v1316 = vpop.f32.mrf.mxu0
      %v1317 = vadd.f32 0.0, %v1316
      %v1318 = vpop.f32.mrf.mxu0
      %v1319 = vadd.f32 0.0, %v1318
      %1320 = vmatmul.bf16.gmra.mxu0 %v1256
      %v1321 = vpop.f32.mrf.mxu0
      %v1322 = vadd.f32 0.0, %v1321
      %v1323 = vpop.f32.mrf.mxu0
      %v1324 = vadd.f32 0.0, %v1323
      %1325 = vmatmul.bf16.gmra.mxu0 %v1259
      %v1326 = vpop.f32.mrf.mxu0
      %v1327 = vadd.f32 0.0, %v1326
      %v1328 = vpop.f32.mrf.mxu0
      %v1329 = vadd.f32 0.0, %v1328
      %1330 = vmatmul.bf16.gmra.mxu0 %v1262
      %v1331 = vpop.f32.mrf.mxu0
      %v1332 = vadd.f32 0.0, %v1331
      %v1333 = vpop.f32.mrf.mxu0
      %v1334 = vadd.f32 0.0, %v1333
      %1335 = vmatmul.bf16.gmra.mxu0 %v1265
      %v1336 = vpop.f32.mrf.mxu0
      %v1337 = vadd.f32 0.0, %v1336
      %v1338 = vpop.f32.mrf.mxu0
      %v1339 = vadd.f32 0.0, %v1338
      %1340 = vmatmul.bf16.gmra.mxu0 %v1268
      %v1341 = vpop.f32.mrf.mxu0
      %v1342 = vadd.f32 0.0, %v1341
      %v1343 = vpop.f32.mrf.mxu0
      %v1344 = vadd.f32 0.0, %v1343
      %1345 = vmatmul.bf16.gmra.mxu0 %v1271
      %v1346 = vpop.f32.mrf.mxu0
      %v1347 = vadd.f32 0.0, %v1346
      %v1348 = vpop.f32.mrf.mxu0
      %v1349 = vadd.f32 0.0, %v1348
      %1350 = vmatmul.bf16.gmra.mxu0 %v1274
      %v1351 = vpop.f32.mrf.mxu0
      %v1352 = vadd.f32 0.0, %v1351
      %v1353 = vpop.f32.mrf.mxu0
      %v1354 = vadd.f32 0.0, %v1353
      %1355 = vmatmul.bf16.gmra.mxu0 %v1277
      %v1356 = vpop.f32.mrf.mxu0
      %v1357 = vadd.f32 0.0, %v1356
      %v1358 = vpop.f32.mrf.mxu0
      %v1359 = vadd.f32 0.0, %v1358
      %1360 = vmatmul.bf16.gmra.mxu0 %v1280
      %v1361 = vpop.f32.mrf.mxu0
      %v1362 = vadd.f32 0.0, %v1361
      %v1363 = vpop.f32.mrf.mxu0
      %v1364 = vadd.f32 0.0, %v1363
      %1365 = vmatmul.bf16.gmra.mxu0 %v1283
      %v1366 = vpop.f32.mrf.mxu0
      %v1367 = vadd.f32 0.0, %v1366
      %v1368 = vpop.f32.mrf.mxu0
      %v1369 = vadd.f32 0.0, %v1368
      %1370 = vmatmul.bf16.gmra.mxu0 %v1286
      %v1371 = vpop.f32.mrf.mxu0
      %v1372 = vadd.f32 0.0, %v1371
      %v1373 = vpop.f32.mrf.mxu0
      %v1374 = vadd.f32 0.0, %v1373
      %1375 = vmatmul.bf16.gmra.mxu0 %v1289
      %v1376 = vpop.f32.mrf.mxu0
      %v1377 = vadd.f32 0.0, %v1376
      %v1378 = vpop.f32.mrf.mxu0
      %v1379 = vadd.f32 0.0, %v1378
      %1380 = vmatmul.bf16.gmra.mxu0 %v1292
      %v1381 = vpop.f32.mrf.mxu0
      %v1382 = vadd.f32 0.0, %v1381
      %v1383 = vpop.f32.mrf.mxu0
      %v1384 = vadd.f32 0.0, %v1383
      %1385 = vdwg.mxu0
      %v1386 = vunpack.c.l.b16 %v799
      %v1387 = vunpack.c.l.b16 %v809
      %v1388 = vpack.c.b16 %v1387, %v1386
      %v1390 = vsel %vm320, %v1388, 0
      %v1393 = vsel %vm369, %v1171, 0
      %1395 = vmatpush.bf16.msra.mxu0 0
      %1396 = vmatpush.bf16.msra.mxu0 0
      %1397 = vmatpush.bf16.msra.mxu0 0
      %1398 = vmatpush.bf16.msra.mxu0 0
      %1399 = vmatpush.bf16.msra.mxu0 0
      %1400 = vmatpush.bf16.msra.mxu0 0
      %1401 = vmatpush.bf16.msra.mxu0 0
      %1402 = vmatpush.bf16.msra.mxu0 %v1393
      %1403 = vmatmul.bf16.gmra.mxu0 %v1390
      %v1404 = vpop.f32.mrf.mxu0
      %v1405 = vadd.f32 %v1307, %v1404
      %v1406 = vpop.f32.mrf.mxu0
      %v1407 = vadd.f32 %v1309, %v1406
      %1408 = vmatmul.bf16.gmra.mxu0 %v1247
      %v1409 = vpop.f32.mrf.mxu0
      %v1410 = vadd.f32 %v1312, %v1409
      %v1411 = vpop.f32.mrf.mxu0
      %v1412 = vadd.f32 %v1314, %v1411
      %1413 = vmatmul.bf16.gmra.mxu0 %v1250
      %v1414 = vpop.f32.mrf.mxu0
      %v1415 = vadd.f32 %v1317, %v1414
      %v1416 = vpop.f32.mrf.mxu0
      %v1417 = vadd.f32 %v1319, %v1416
      %1418 = vmatmul.bf16.gmra.mxu0 %v1253
      %v1419 = vpop.f32.mrf.mxu0
      %v1420 = vadd.f32 %v1322, %v1419
      %v1421 = vpop.f32.mrf.mxu0
      %v1422 = vadd.f32 %v1324, %v1421
      %1423 = vmatmul.bf16.gmra.mxu0 %v1256
      %v1424 = vpop.f32.mrf.mxu0
      %v1425 = vadd.f32 %v1327, %v1424
      %v1426 = vpop.f32.mrf.mxu0
      %v1427 = vadd.f32 %v1329, %v1426
      %1428 = vmatmul.bf16.gmra.mxu0 %v1259
      %v1429 = vpop.f32.mrf.mxu0
      %v1430 = vadd.f32 %v1332, %v1429
      %v1431 = vpop.f32.mrf.mxu0
      %v1432 = vadd.f32 %v1334, %v1431
      %1433 = vmatmul.bf16.gmra.mxu0 %v1262
      %v1434 = vpop.f32.mrf.mxu0
      %v1435 = vadd.f32 %v1337, %v1434
      %v1436 = vpop.f32.mrf.mxu0
      %v1437 = vadd.f32 %v1339, %v1436
      %1438 = vmatmul.bf16.gmra.mxu0 %v1265
      %v1439 = vpop.f32.mrf.mxu0
      %v1440 = vadd.f32 %v1342, %v1439
      %v1441 = vpop.f32.mrf.mxu0
      %v1442 = vadd.f32 %v1344, %v1441
      %1443 = vmatmul.bf16.gmra.mxu0 %v1268
      %v1444 = vpop.f32.mrf.mxu0
      %v1445 = vadd.f32 %v1347, %v1444
      %v1446 = vpop.f32.mrf.mxu0
      %v1447 = vadd.f32 %v1349, %v1446
      %1448 = vmatmul.bf16.gmra.mxu0 %v1271
      %v1449 = vpop.f32.mrf.mxu0
      %v1450 = vadd.f32 %v1352, %v1449
      %v1451 = vpop.f32.mrf.mxu0
      %v1452 = vadd.f32 %v1354, %v1451
      %1453 = vmatmul.bf16.gmra.mxu0 %v1274
      %v1454 = vpop.f32.mrf.mxu0
      %v1455 = vadd.f32 %v1357, %v1454
      %v1456 = vpop.f32.mrf.mxu0
      %v1457 = vadd.f32 %v1359, %v1456
      %1458 = vmatmul.bf16.gmra.mxu0 %v1277
      %v1459 = vpop.f32.mrf.mxu0
      %v1460 = vadd.f32 %v1362, %v1459
      %v1461 = vpop.f32.mrf.mxu0
      %v1462 = vadd.f32 %v1364, %v1461
      %1463 = vmatmul.bf16.gmra.mxu0 %v1280
      %v1464 = vpop.f32.mrf.mxu0
      %v1465 = vadd.f32 %v1367, %v1464
      %v1466 = vpop.f32.mrf.mxu0
      %v1467 = vadd.f32 %v1369, %v1466
      %1468 = vmatmul.bf16.gmra.mxu0 %v1283
      %v1469 = vpop.f32.mrf.mxu0
      %v1470 = vadd.f32 %v1372, %v1469
      %v1471 = vpop.f32.mrf.mxu0
      %v1472 = vadd.f32 %v1374, %v1471
      %1473 = vmatmul.bf16.gmra.mxu0 %v1286
      %v1474 = vpop.f32.mrf.mxu0
      %v1475 = vadd.f32 %v1377, %v1474
      %v1476 = vpop.f32.mrf.mxu0
      %v1477 = vadd.f32 %v1379, %v1476
      %1478 = vmatmul.bf16.gmra.mxu0 %v1289
      %v1479 = vpop.f32.mrf.mxu0
      %v1480 = vadd.f32 %v1382, %v1479
      %v1481 = vpop.f32.mrf.mxu0
      %v1482 = vadd.f32 %v1384, %v1481
      %1483 = vdwg.mxu0
      %v1485 = vshrl.u32 %v780, 16
      %v1487 = vrot.slane %v1485, 4
      %v1488 = vshll.u32 %v780, 16
      %v1490 = vrot.slane %v1488, 5
      %v1491 = vor.u32 %v1487, %v1490
      %v1492 = vrot.slane %v1491, 4
      %v1494 = vshll.u32 %v781, 16
      %v1496 = vrot.slane %v1494, 5
      %v1497 = vsel %vm785, %v1492, %v1496
      %v1498 = vshrl.u32 %v781, 16
      %v1500 = vrot.slane %v1498, 4
      %v1501 = vor.u32 %v1500, %v1496
      %v1502 = vrot.slane %v1501, 4
      %v1504 = vshll.u32 %v782, 16
      %v1506 = vrot.slane %v1504, 5
      %v1507 = vsel %vm785, %v1502, %v1506
      %s1508 = scalar_lea.vmem %s1, 14
      %v1509 = vld [vmem:[%s1508] sm:$0x3]
      %v1510 = vunpack.c.l.b16 %v1497
      %v1511 = vunpack.c.l.b16 %v1507
      %v1512 = vpack.c.b16 %v1511, %v1510
      %v1514 = vsel %vm320, %v1512, 0
      %v1517 = vsel %vm369, %v1509, 0
      %1519 = vmatpush.bf16.msra.mxu0 0
      %1520 = vmatpush.bf16.msra.mxu0 0
      %1521 = vmatpush.bf16.msra.mxu0 0
      %1522 = vmatpush.bf16.msra.mxu0 0
      %1523 = vmatpush.bf16.msra.mxu0 0
      %1524 = vmatpush.bf16.msra.mxu0 0
      %1525 = vmatpush.bf16.msra.mxu0 0
      %1526 = vmatpush.bf16.msra.mxu0 %v1517
      %1527 = vmatmul.bf16.gmra.mxu0 %v1250
      %v1528 = vpop.f32.mrf.mxu0
      %v1529 = vadd.f32 0.0, %v1528
      %v1530 = vpop.f32.mrf.mxu0
      %v1531 = vadd.f32 0.0, %v1530
      %1532 = vmatmul.bf16.gmra.mxu0 %v1253
      %v1533 = vpop.f32.mrf.mxu0
      %v1534 = vadd.f32 0.0, %v1533
      %v1535 = vpop.f32.mrf.mxu0
      %v1536 = vadd.f32 0.0, %v1535
      %1537 = vmatmul.bf16.gmra.mxu0 %v1256
      %v1538 = vpop.f32.mrf.mxu0
      %v1539 = vadd.f32 0.0, %v1538
      %v1540 = vpop.f32.mrf.mxu0
      %v1541 = vadd.f32 0.0, %v1540
      %1542 = vmatmul.bf16.gmra.mxu0 %v1259
      %v1543 = vpop.f32.mrf.mxu0
      %v1544 = vadd.f32 0.0, %v1543
      %v1545 = vpop.f32.mrf.mxu0
      %v1546 = vadd.f32 0.0, %v1545
      %1547 = vmatmul.bf16.gmra.mxu0 %v1262
      %v1548 = vpop.f32.mrf.mxu0
      %v1549 = vadd.f32 0.0, %v1548
      %v1550 = vpop.f32.mrf.mxu0
      %v1551 = vadd.f32 0.0, %v1550
      %1552 = vmatmul.bf16.gmra.mxu0 %v1265
      %v1553 = vpop.f32.mrf.mxu0
      %v1554 = vadd.f32 0.0, %v1553
      %v1555 = vpop.f32.mrf.mxu0
      %v1556 = vadd.f32 0.0, %v1555
      %1557 = vmatmul.bf16.gmra.mxu0 %v1268
      %v1558 = vpop.f32.mrf.mxu0
      %v1559 = vadd.f32 0.0, %v1558
      %v1560 = vpop.f32.mrf.mxu0
      %v1561 = vadd.f32 0.0, %v1560
      %1562 = vmatmul.bf16.gmra.mxu0 %v1271
      %v1563 = vpop.f32.mrf.mxu0
      %v1564 = vadd.f32 0.0, %v1563
      %v1565 = vpop.f32.mrf.mxu0
      %v1566 = vadd.f32 0.0, %v1565
      %1567 = vmatmul.bf16.gmra.mxu0 %v1274
      %v1568 = vpop.f32.mrf.mxu0
      %v1569 = vadd.f32 0.0, %v1568
      %v1570 = vpop.f32.mrf.mxu0
      %v1571 = vadd.f32 0.0, %v1570
      %1572 = vmatmul.bf16.gmra.mxu0 %v1277
      %v1573 = vpop.f32.mrf.mxu0
      %v1574 = vadd.f32 0.0, %v1573
      %v1575 = vpop.f32.mrf.mxu0
      %v1576 = vadd.f32 0.0, %v1575
      %1577 = vmatmul.bf16.gmra.mxu0 %v1280
      %v1578 = vpop.f32.mrf.mxu0
      %v1579 = vadd.f32 0.0, %v1578
      %v1580 = vpop.f32.mrf.mxu0
      %v1581 = vadd.f32 0.0, %v1580
      %1582 = vmatmul.bf16.gmra.mxu0 %v1283
      %v1583 = vpop.f32.mrf.mxu0
      %v1584 = vadd.f32 0.0, %v1583
      %v1585 = vpop.f32.mrf.mxu0
      %v1586 = vadd.f32 0.0, %v1585
      %1587 = vmatmul.bf16.gmra.mxu0 %v1286
      %v1588 = vpop.f32.mrf.mxu0
      %v1589 = vadd.f32 0.0, %v1588
      %v1590 = vpop.f32.mrf.mxu0
      %v1591 = vadd.f32 0.0, %v1590
      %1592 = vmatmul.bf16.gmra.mxu0 %v1289
      %v1593 = vpop.f32.mrf.mxu0
      %v1594 = vadd.f32 0.0, %v1593
      %v1595 = vpop.f32.mrf.mxu0
      %v1596 = vadd.f32 0.0, %v1595
      %1597 = vmatmul.bf16.gmra.mxu0 %v1292
      %v1598 = vpop.f32.mrf.mxu0
      %v1599 = vadd.f32 0.0, %v1598
      %v1600 = vpop.f32.mrf.mxu0
      %v1601 = vadd.f32 0.0, %v1600
      %1602 = vmatmul.bf16.gmra.mxu0 %v1514
      %v1603 = vpop.f32.mrf.mxu0
      %v1604 = vadd.f32 0.0, %v1603
      %v1605 = vpop.f32.mrf.mxu0
      %v1606 = vadd.f32 0.0, %v1605
      %1607 = vdwg.mxu0
      %v1608 = vadd.f32 %v1405, %v1529
      %v1609 = vadd.f32 %v1407, %v1531
      %v1610 = vadd.f32 %v1410, %v1534
      %v1611 = vadd.f32 %v1412, %v1536
      %v1612 = vadd.f32 %v1415, %v1539
      %v1613 = vadd.f32 %v1417, %v1541
      %v1614 = vadd.f32 %v1420, %v1544
      %v1615 = vadd.f32 %v1422, %v1546
      %v1616 = vadd.f32 %v1425, %v1549
      %v1617 = vadd.f32 %v1427, %v1551
      %v1618 = vadd.f32 %v1430, %v1554
      %v1619 = vadd.f32 %v1432, %v1556
      %v1620 = vadd.f32 %v1435, %v1559
      %v1621 = vadd.f32 %v1437, %v1561
      %v1622 = vadd.f32 %v1440, %v1564
      %v1623 = vadd.f32 %v1442, %v1566
      %v1624 = vadd.f32 %v1445, %v1569
      %v1625 = vadd.f32 %v1447, %v1571
      %v1626 = vadd.f32 %v1450, %v1574
      %v1627 = vadd.f32 %v1452, %v1576
      %v1628 = vadd.f32 %v1455, %v1579
      %v1629 = vadd.f32 %v1457, %v1581
      %v1630 = vadd.f32 %v1460, %v1584
      %v1631 = vadd.f32 %v1462, %v1586
      %v1632 = vadd.f32 %v1465, %v1589
      %v1633 = vadd.f32 %v1467, %v1591
      %v1634 = vadd.f32 %v1470, %v1594
      %v1635 = vadd.f32 %v1472, %v1596
      %v1636 = vadd.f32 %v1475, %v1599
      %v1637 = vadd.f32 %v1477, %v1601
      %v1638 = vadd.f32 %v1480, %v1604
      %v1639 = vadd.f32 %v1482, %v1606
      %v1640 = vld [vmem:[#allocation2] sm:$0xff]
      %v1641 = vld [vmem:[#allocation2 + $0x8] sm:$0xff]
      %v1642 = vld [vmem:[#allocation2 + $0x10] sm:$0xff]
      %v1643 = vld [vmem:[#allocation2 + $0x18] sm:$0xff]
      %v1644 = vld [vmem:[#allocation2 + $0x20] sm:$0xff]
      %v1645 = vld [vmem:[#allocation2 + $0x28] sm:$0xff]
      %v1646 = vld [vmem:[#allocation2 + $0x30] sm:$0xff]
      %v1647 = vld [vmem:[#allocation2 + $0x38] sm:$0xff]
      %v1648 = vld [vmem:[#allocation2 + $0x40] sm:$0xff]
      %v1649 = vld [vmem:[#allocation2 + $0x48] sm:$0xff]
      %v1650 = vld [vmem:[#allocation2 + $0x50] sm:$0xff]
      %v1651 = vld [vmem:[#allocation2 + $0x58] sm:$0xff]
      %v1652 = vld [vmem:[#allocation2 + $0x60] sm:$0xff]
      %v1653 = vld [vmem:[#allocation2 + $0x68] sm:$0xff]
      %v1654 = vld [vmem:[#allocation2 + $0x70] sm:$0xff]
      %v1655 = vld [vmem:[#allocation2 + $0x78] sm:$0xff]
      %v1656 = vld [vmem:[#allocation2 + $0x80] sm:$0xff]
      %v1657 = vld [vmem:[#allocation2 + $0x88] sm:$0xff]
      %v1658 = vld [vmem:[#allocation2 + $0x90] sm:$0xff]
      %v1659 = vld [vmem:[#allocation2 + $0x98] sm:$0xff]
      %v1660 = vld [vmem:[#allocation2 + $0xa0] sm:$0xff]
      %v1661 = vld [vmem:[#allocation2 + $0xa8] sm:$0xff]
      %v1662 = vld [vmem:[#allocation2 + $0xb0] sm:$0xff]
      %v1663 = vld [vmem:[#allocation2 + $0xb8] sm:$0xff]
      %v1664 = vld [vmem:[#allocation2 + $0xc0] sm:$0xff]
      %v1665 = vld [vmem:[#allocation2 + $0xc8] sm:$0xff]
      %v1666 = vld [vmem:[#allocation2 + $0xd0] sm:$0xff]
      %v1667 = vld [vmem:[#allocation2 + $0xd8] sm:$0xff]
      %v1668 = vld [vmem:[#allocation2 + $0xe0] sm:$0xff]
      %v1669 = vld [vmem:[#allocation2 + $0xe8] sm:$0xff]
      %v1670 = vld [vmem:[#allocation2 + $0xf0] sm:$0xff]
      %v1671 = vld [vmem:[#allocation2 + $0xf8] sm:$0xff]
      %v1672 = vadd.f32 %v1640, %v1608
      %v1673 = vadd.f32 %v1641, %v1609
      %v1674 = vadd.f32 %v1642, %v1610
      %v1675 = vadd.f32 %v1643, %v1611
      %v1676 = vadd.f32 %v1644, %v1612
      %v1677 = vadd.f32 %v1645, %v1613
      %v1678 = vadd.f32 %v1646, %v1614
      %v1679 = vadd.f32 %v1647, %v1615
      %v1680 = vadd.f32 %v1648, %v1616
      %v1681 = vadd.f32 %v1649, %v1617
      %v1682 = vadd.f32 %v1650, %v1618
      %v1683 = vadd.f32 %v1651, %v1619
      %v1684 = vadd.f32 %v1652, %v1620
      %v1685 = vadd.f32 %v1653, %v1621
      %v1686 = vadd.f32 %v1654, %v1622
      %v1687 = vadd.f32 %v1655, %v1623
      %v1688 = vadd.f32 %v1656, %v1624
      %v1689 = vadd.f32 %v1657, %v1625
      %v1690 = vadd.f32 %v1658, %v1626
      %v1691 = vadd.f32 %v1659, %v1627
      %v1692 = vadd.f32 %v1660, %v1628
      %v1693 = vadd.f32 %v1661, %v1629
      %v1694 = vadd.f32 %v1662, %v1630
      %v1695 = vadd.f32 %v1663, %v1631
      %v1696 = vadd.f32 %v1664, %v1632
      %v1697 = vadd.f32 %v1665, %v1633
      %v1698 = vadd.f32 %v1666, %v1634
      %v1699 = vadd.f32 %v1667, %v1635
      %v1700 = vadd.f32 %v1668, %v1636
      %v1701 = vadd.f32 %v1669, %v1637
      %v1702 = vadd.f32 %v1670, %v1638
      %v1703 = vadd.f32 %v1671, %v1639
      %1704 = vst.msk [vmem:[#allocation2] sm:$0xff] %vm696, %v1672
      %1705 = vst.msk [vmem:[#allocation2 + $0x8] sm:$0xff] %vm696, %v1673
      %1706 = vst.msk [vmem:[#allocation2 + $0x10] sm:$0xff] %vm696, %v1674
      %1707 = vst.msk [vmem:[#allocation2 + $0x18] sm:$0xff] %vm696, %v1675
      %1708 = vst.msk [vmem:[#allocation2 + $0x20] sm:$0xff] %vm696, %v1676
      %1709 = vst.msk [vmem:[#allocation2 + $0x28] sm:$0xff] %vm696, %v1677
      %1710 = vst.msk [vmem:[#allocation2 + $0x30] sm:$0xff] %vm696, %v1678
      %1711 = vst.msk [vmem:[#allocation2 + $0x38] sm:$0xff] %vm696, %v1679
      %1712 = vst.msk [vmem:[#allocation2 + $0x40] sm:$0xff] %vm696, %v1680
      %1713 = vst.msk [vmem:[#allocation2 + $0x48] sm:$0xff] %vm696, %v1681
      %1714 = vst.msk [vmem:[#allocation2 + $0x50] sm:$0xff] %vm696, %v1682
      %1715 = vst.msk [vmem:[#allocation2 + $0x58] sm:$0xff] %vm696, %v1683
      %1716 = vst.msk [vmem:[#allocation2 + $0x60] sm:$0xff] %vm696, %v1684
      %1717 = vst.msk [vmem:[#allocation2 + $0x68] sm:$0xff] %vm696, %v1685
      %1718 = vst.msk [vmem:[#allocation2 + $0x70] sm:$0xff] %vm696, %v1686
      %1719 = vst.msk [vmem:[#allocation2 + $0x78] sm:$0xff] %vm696, %v1687
      %1720 = vst.msk [vmem:[#allocation2 + $0x80] sm:$0xff] %vm696, %v1688
      %1721 = vst.msk [vmem:[#allocation2 + $0x88] sm:$0xff] %vm696, %v1689
      %1722 = vst.msk [vmem:[#allocation2 + $0x90] sm:$0xff] %vm696, %v1690
      %1723 = vst.msk [vmem:[#allocation2 + $0x98] sm:$0xff] %vm696, %v1691
      %1724 = vst.msk [vmem:[#allocation2 + $0xa0] sm:$0xff] %vm696, %v1692
      %1725 = vst.msk [vmem:[#allocation2 + $0xa8] sm:$0xff] %vm696, %v1693
      %1726 = vst.msk [vmem:[#allocation2 + $0xb0] sm:$0xff] %vm696, %v1694
      %1727 = vst.msk [vmem:[#allocation2 + $0xb8] sm:$0xff] %vm696, %v1695
      %1728 = vst.msk [vmem:[#allocation2 + $0xc0] sm:$0xff] %vm696, %v1696
      %1729 = vst.msk [vmem:[#allocation2 + $0xc8] sm:$0xff] %vm696, %v1697
      %1730 = vst.msk [vmem:[#allocation2 + $0xd0] sm:$0xff] %vm696, %v1698
      %1731 = vst.msk [vmem:[#allocation2 + $0xd8] sm:$0xff] %vm696, %v1699
      %1732 = vst.msk [vmem:[#allocation2 + $0xe0] sm:$0xff] %vm696, %v1700
      %1733 = vst.msk [vmem:[#allocation2 + $0xe8] sm:$0xff] %vm696, %v1701
      %1734 = vst.msk [vmem:[#allocation2 + $0xf0] sm:$0xff] %vm696, %v1702
      %1735 = vst.msk [vmem:[#allocation2 + $0xf8] sm:$0xff] %vm696, %v1703
      %v1736 = vld [vmem:[%s200] sm:$0xe]
      %v1737 = vld [vmem:[%s200 + $0x4] sm:$0xf]
      %v1738 = vld [vmem:[%s200 + $0x8] sm:$0x1]
      %v1739 = vld [vmem:[%s200 + $0xc] sm:$0xe]
      %v1740 = vld [vmem:[%s200 + $0x10] sm:$0xf]
      %v1741 = vld [vmem:[%s200 + $0x14] sm:$0x1]
      %v1742 = vld [vmem:[%s200 + $0x18] sm:$0xe]
      %v1743 = vld [vmem:[%s200 + $0x1c] sm:$0xf]
      %v1744 = vld [vmem:[%s200 + $0x20] sm:$0x1]
      %v1745 = vld [vmem:[%s200 + $0x24] sm:$0xe]
      %v1746 = vld [vmem:[%s200 + $0x28] sm:$0xf]
      %v1747 = vld [vmem:[%s200 + $0x2c] sm:$0x1]
      %v1748 = vld [vmem:[%s200 + $0x30] sm:$0xe]
      %v1749 = vld [vmem:[%s200 + $0x34] sm:$0xf]
      %v1750 = vld [vmem:[%s200 + $0x38] sm:$0x1]
      %v1751 = vld [vmem:[%s200 + $0x3c] sm:$0xe]
      %v1752 = vld [vmem:[%s200 + $0x40] sm:$0xf]
      %v1753 = vld [vmem:[%s200 + $0x44] sm:$0x1]
      %v1754 = vld [vmem:[%s200 + $0x48] sm:$0xe]
      %v1755 = vld [vmem:[%s200 + $0x4c] sm:$0xf]
      %v1756 = vld [vmem:[%s200 + $0x50] sm:$0x1]
      %v1757 = vld [vmem:[%s200 + $0x54] sm:$0xe]
      %v1758 = vld [vmem:[%s200 + $0x58] sm:$0xf]
      %v1759 = vld [vmem:[%s200 + $0x5c] sm:$0x1]
      %v1760 = vld [vmem:[%s200 + $0x60] sm:$0xe]
      %v1761 = vld [vmem:[%s200 + $0x64] sm:$0xf]
      %v1762 = vld [vmem:[%s200 + $0x68] sm:$0x1]
      %v1763 = vld [vmem:[%s200 + $0x6c] sm:$0xe]
      %v1764 = vld [vmem:[%s200 + $0x70] sm:$0xf]
      %v1765 = vld [vmem:[%s200 + $0x74] sm:$0x1]
      %v1766 = vld [vmem:[%s200 + $0x78] sm:$0xe]
      %v1767 = vld [vmem:[%s200 + $0x7c] sm:$0xf]
      %v1768 = vld [vmem:[%s200 + $0x80] sm:$0x1]
      %v1769 = vld [vmem:[%s200 + $0x84] sm:$0xe]
      %v1770 = vld [vmem:[%s200 + $0x88] sm:$0xf]
      %v1771 = vld [vmem:[%s200 + $0x8c] sm:$0x1]
      %v1772 = vld [vmem:[%s200 + $0x90] sm:$0xe]
      %v1773 = vld [vmem:[%s200 + $0x94] sm:$0xf]
      %v1774 = vld [vmem:[%s200 + $0x98] sm:$0x1]
      %v1775 = vld [vmem:[%s200 + $0x9c] sm:$0xe]
      %v1776 = vld [vmem:[%s200 + $0xa0] sm:$0xf]
      %v1777 = vld [vmem:[%s200 + $0xa4] sm:$0x1]
      %v1778 = vld [vmem:[%s200 + $0xa8] sm:$0xe]
      %v1779 = vld [vmem:[%s200 + $0xac] sm:$0xf]
      %v1780 = vld [vmem:[%s200 + $0xb0] sm:$0x1]
      %v1781 = vld [vmem:[%s200 + $0xb4] sm:$0xe]
      %v1782 = vld [vmem:[%s200 + $0xb8] sm:$0xf]
      %v1783 = vld [vmem:[%s200 + $0xbc] sm:$0x1]
      %v1784 = vld [vmem:[%s200 + $0xc0] sm:$0xe]
      %v1785 = vld [vmem:[%s200 + $0xc4] sm:$0xf]
      %v1786 = vld [vmem:[%s200 + $0xc8] sm:$0x1]
      %v1787 = vld [vmem:[%s200 + $0xcc] sm:$0xe]
      %v1788 = vld [vmem:[%s200 + $0xd0] sm:$0xf]
      %v1789 = vld [vmem:[%s200 + $0xd4] sm:$0x1]
      %vm1838 = vcmask 1042432
      %vm1839 = vcmask 1046532
      %vm1840 = vmor %vm1838, %vm1839
      %v1841 = vrot.slane %v1736, 5
      %v1842 = vrot.slane %v1841, 4
      %v1843 = vrot.slane %v1737, 5
      %v1844 = vsel %vm1840, %v1842, %v1843
      %v1845 = vrot.slane %v1843, 4
      %v1846 = vrot.slane %v1738, 5
      %v1847 = vsel %vm1840, %v1845, %v1846
      %v1848 = vrot.slane %v1739, 5
      %v1849 = vrot.slane %v1848, 4
      %v1850 = vrot.slane %v1740, 5
      %v1851 = vsel %vm1840, %v1849, %v1850
      %v1852 = vrot.slane %v1850, 4
      %v1853 = vrot.slane %v1741, 5
      %v1854 = vsel %vm1840, %v1852, %v1853
      %v1855 = vrot.slane %v1742, 5
      %v1856 = vrot.slane %v1855, 4
      %v1857 = vrot.slane %v1743, 5
      %v1858 = vsel %vm1840, %v1856, %v1857
      %v1859 = vrot.slane %v1857, 4
      %v1860 = vrot.slane %v1744, 5
      %v1861 = vsel %vm1840, %v1859, %v1860
      %v1862 = vrot.slane %v1745, 5
      %v1863 = vrot.slane %v1862, 4
      %v1864 = vrot.slane %v1746, 5
      %v1865 = vsel %vm1840, %v1863, %v1864
      %v1866 = vrot.slane %v1864, 4
      %v1867 = vrot.slane %v1747, 5
      %v1868 = vsel %vm1840, %v1866, %v1867
      %v1869 = vrot.slane %v1748, 5
      %v1870 = vrot.slane %v1869, 4
      %v1871 = vrot.slane %v1749, 5
      %v1872 = vsel %vm1840, %v1870, %v1871
      %v1873 = vrot.slane %v1871, 4
      %v1874 = vrot.slane %v1750, 5
      %v1875 = vsel %vm1840, %v1873, %v1874
      %v1876 = vrot.slane %v1751, 5
      %v1877 = vrot.slane %v1876, 4
      %v1878 = vrot.slane %v1752, 5
      %v1879 = vsel %vm1840, %v1877, %v1878
      %v1880 = vrot.slane %v1878, 4
      %v1881 = vrot.slane %v1753, 5
      %v1882 = vsel %vm1840, %v1880, %v1881
      %v1883 = vrot.slane %v1754, 5
      %v1884 = vrot.slane %v1883, 4
      %v1885 = vrot.slane %v1755, 5
      %v1886 = vsel %vm1840, %v1884, %v1885
      %v1887 = vrot.slane %v1885, 4
      %v1888 = vrot.slane %v1756, 5
      %v1889 = vsel %vm1840, %v1887, %v1888
      %v1890 = vrot.slane %v1757, 5
      %v1891 = vrot.slane %v1890, 4
      %v1892 = vrot.slane %v1758, 5
      %v1893 = vsel %vm1840, %v1891, %v1892
      %v1894 = vrot.slane %v1892, 4
      %v1895 = vrot.slane %v1759, 5
      %v1896 = vsel %vm1840, %v1894, %v1895
      %v1897 = vrot.slane %v1760, 5
      %v1898 = vrot.slane %v1897, 4
      %v1899 = vrot.slane %v1761, 5
      %v1900 = vsel %vm1840, %v1898, %v1899
      %v1901 = vrot.slane %v1899, 4
      %v1902 = vrot.slane %v1762, 5
      %v1903 = vsel %vm1840, %v1901, %v1902
      %v1904 = vrot.slane %v1763, 5
      %v1905 = vrot.slane %v1904, 4
      %v1906 = vrot.slane %v1764, 5
      %v1907 = vsel %vm1840, %v1905, %v1906
      %v1908 = vrot.slane %v1906, 4
      %v1909 = vrot.slane %v1765, 5
      %v1910 = vsel %vm1840, %v1908, %v1909
      %v1911 = vrot.slane %v1766, 5
      %v1912 = vrot.slane %v1911, 4
      %v1913 = vrot.slane %v1767, 5
      %v1914 = vsel %vm1840, %v1912, %v1913
      %v1915 = vrot.slane %v1913, 4
      %v1916 = vrot.slane %v1768, 5
      %v1917 = vsel %vm1840, %v1915, %v1916
      %v1918 = vrot.slane %v1769, 5
      %v1919 = vrot.slane %v1918, 4
      %v1920 = vrot.slane %v1770, 5
      %v1921 = vsel %vm1840, %v1919, %v1920
      %v1922 = vrot.slane %v1920, 4
      %v1923 = vrot.slane %v1771, 5
      %v1924 = vsel %vm1840, %v1922, %v1923
      %v1925 = vrot.slane %v1772, 5
      %v1926 = vrot.slane %v1925, 4
      %v1927 = vrot.slane %v1773, 5
      %v1928 = vsel %vm1840, %v1926, %v1927
      %v1929 = vrot.slane %v1927, 4
      %v1930 = vrot.slane %v1774, 5
      %v1931 = vsel %vm1840, %v1929, %v1930
      %v1932 = vrot.slane %v1775, 5
      %v1933 = vrot.slane %v1932, 4
      %v1934 = vrot.slane %v1776, 5
      %v1935 = vsel %vm1840, %v1933, %v1934
      %v1936 = vrot.slane %v1934, 4
      %v1937 = vrot.slane %v1777, 5
      %v1938 = vsel %vm1840, %v1936, %v1937
      %v1939 = vrot.slane %v1778, 5
      %v1940 = vrot.slane %v1939, 4
      %v1941 = vrot.slane %v1779, 5
      %v1942 = vsel %vm1840, %v1940, %v1941
      %v1943 = vrot.slane %v1941, 4
      %v1944 = vrot.slane %v1780, 5
      %v1945 = vsel %vm1840, %v1943, %v1944
      %v1946 = vrot.slane %v1781, 5
      %v1947 = vrot.slane %v1946, 4
      %v1948 = vrot.slane %v1782, 5
      %v1949 = vsel %vm1840, %v1947, %v1948
      %v1950 = vrot.slane %v1948, 4
      %v1951 = vrot.slane %v1783, 5
      %v1952 = vsel %vm1840, %v1950, %v1951
      %s1953 = scalar_lea.vmem %s1, 4
      %v1954 = vld [vmem:[%s1953] sm:$0x3]
      %v1958 = vrot.slane %v1784, 5
      %v1959 = vrot.slane %v1958, 4
      %v1960 = vrot.slane %v1785, 5
      %v1961 = vsel %vm1840, %v1959, %v1960
      %v1962 = vrot.slane %v1960, 4
      %v1963 = vrot.slane %v1786, 5
      %v1964 = vsel %vm1840, %v1962, %v1963
      %s1965 = scalar_lea.vmem %s1, 10
      %v1966 = vld [vmem:[%s1965] sm:$0x3]
      %v1967 = vunpack.c.l.b16 %v1851
      %v1968 = vunpack.c.l.b16 %v1854
      %v1969 = vunpack.c.l.b16 %v1858
      %v1970 = vunpack.c.l.b16 %v1861
      %v1971 = vunpack.c.l.b16 %v1865
      %v1972 = vunpack.c.l.b16 %v1868
      %v1973 = vunpack.c.l.b16 %v1872
      %v1974 = vunpack.c.l.b16 %v1875
      %v1975 = vunpack.c.l.b16 %v1879
      %v1976 = vunpack.c.l.b16 %v1882
      %v1977 = vunpack.c.l.b16 %v1886
      %v1978 = vunpack.c.l.b16 %v1889
      %v1979 = vunpack.c.l.b16 %v1893
      %v1980 = vunpack.c.l.b16 %v1896
      %v1981 = vunpack.c.l.b16 %v1900
      %v1982 = vunpack.c.l.b16 %v1903
      %v1983 = vunpack.c.l.b16 %v1907
      %v1984 = vunpack.c.l.b16 %v1910
      %v1985 = vunpack.c.l.b16 %v1914
      %v1986 = vunpack.c.l.b16 %v1917
      %v1987 = vunpack.c.l.b16 %v1921
      %v1988 = vunpack.c.l.b16 %v1924
      %v1989 = vunpack.c.l.b16 %v1928
      %v1990 = vunpack.c.l.b16 %v1931
      %v1991 = vunpack.c.l.b16 %v1935
      %v1992 = vunpack.c.l.b16 %v1938
      %v1993 = vunpack.c.l.b16 %v1942
      %v1994 = vunpack.c.l.b16 %v1945
      %v1995 = vunpack.c.l.b16 %v1949
      %v1996 = vunpack.c.l.b16 %v1952
      %v1997 = vunpack.c.l.b16 %v1961
      %v1998 = vunpack.c.l.b16 %v1964
      %v1999 = vpack.c.b16 %v1968, %v1967
      %v2000 = vpack.c.b16 %v1970, %v1969
      %v2001 = vpack.c.b16 %v1972, %v1971
      %v2002 = vpack.c.b16 %v1974, %v1973
      %v2003 = vpack.c.b16 %v1976, %v1975
      %v2004 = vpack.c.b16 %v1978, %v1977
      %v2005 = vpack.c.b16 %v1980, %v1979
      %v2006 = vpack.c.b16 %v1982, %v1981
      %v2007 = vpack.c.b16 %v1984, %v1983
      %v2008 = vpack.c.b16 %v1986, %v1985
      %v2009 = vpack.c.b16 %v1988, %v1987
      %v2010 = vpack.c.b16 %v1990, %v1989
      %v2011 = vpack.c.b16 %v1992, %v1991
      %v2012 = vpack.c.b16 %v1994, %v1993
      %v2013 = vpack.c.b16 %v1996, %v1995
      %v2014 = vpack.c.b16 %v1998, %v1997
      %v2016 = vsel %vm320, %v1999, 0
      %v2019 = vsel %vm320, %v2000, 0
      %v2022 = vsel %vm320, %v2001, 0
      %v2025 = vsel %vm320, %v2002, 0
      %v2028 = vsel %vm320, %v2003, 0
      %v2031 = vsel %vm320, %v2004, 0
      %v2034 = vsel %vm320, %v2005, 0
      %v2037 = vsel %vm320, %v2006, 0
      %v2040 = vsel %vm320, %v2007, 0
      %v2043 = vsel %vm320, %v2008, 0
      %v2046 = vsel %vm320, %v2009, 0
      %v2049 = vsel %vm320, %v2010, 0
      %v2052 = vsel %vm320, %v2011, 0
      %v2055 = vsel %vm320, %v2012, 0
      %v2058 = vsel %vm320, %v2013, 0
      %v2061 = vsel %vm320, %v2014, 0
      %v2064 = vsel %vm369, %v1966, 0
      %2066 = vmatpush.bf16.msra.mxu0 0
      %2067 = vmatpush.bf16.msra.mxu0 0
      %2068 = vmatpush.bf16.msra.mxu0 0
      %2069 = vmatpush.bf16.msra.mxu0 0
      %2070 = vmatpush.bf16.msra.mxu0 0
      %2071 = vmatpush.bf16.msra.mxu0 0
      %2072 = vmatpush.bf16.msra.mxu0 0
      %2073 = vmatpush.bf16.msra.mxu0 %v2064
      %2074 = vmatmul.bf16.gmra.mxu0 %v2016
      %v2075 = vpop.f32.mrf.mxu0
      %v2076 = vadd.f32 0.0, %v2075
      %v2077 = vpop.f32.mrf.mxu0
      %v2078 = vadd.f32 0.0, %v2077
      %2079 = vmatmul.bf16.gmra.mxu0 %v2019
      %v2080 = vpop.f32.mrf.mxu0
      %v2081 = vadd.f32 0.0, %v2080
      %v2082 = vpop.f32.mrf.mxu0
      %v2083 = vadd.f32 0.0, %v2082
      %2084 = vmatmul.bf16.gmra.mxu0 %v2022
      %v2085 = vpop.f32.mrf.mxu0
      %v2086 = vadd.f32 0.0, %v2085
      %v2087 = vpop.f32.mrf.mxu0
      %v2088 = vadd.f32 0.0, %v2087
      %2089 = vmatmul.bf16.gmra.mxu0 %v2025
      %v2090 = vpop.f32.mrf.mxu0
      %v2091 = vadd.f32 0.0, %v2090
      %v2092 = vpop.f32.mrf.mxu0
      %v2093 = vadd.f32 0.0, %v2092
      %2094 = vmatmul.bf16.gmra.mxu0 %v2028
      %v2095 = vpop.f32.mrf.mxu0
      %v2096 = vadd.f32 0.0, %v2095
      %v2097 = vpop.f32.mrf.mxu0
      %v2098 = vadd.f32 0.0, %v2097
      %2099 = vmatmul.bf16.gmra.mxu0 %v2031
      %v2100 = vpop.f32.mrf.mxu0
      %v2101 = vadd.f32 0.0, %v2100
      %v2102 = vpop.f32.mrf.mxu0
      %v2103 = vadd.f32 0.0, %v2102
      %2104 = vmatmul.bf16.gmra.mxu0 %v2034
      %v2105 = vpop.f32.mrf.mxu0
      %v2106 = vadd.f32 0.0, %v2105
      %v2107 = vpop.f32.mrf.mxu0
      %v2108 = vadd.f32 0.0, %v2107
      %2109 = vmatmul.bf16.gmra.mxu0 %v2037
      %v2110 = vpop.f32.mrf.mxu0
      %v2111 = vadd.f32 0.0, %v2110
      %v2112 = vpop.f32.mrf.mxu0
      %v2113 = vadd.f32 0.0, %v2112
      %2114 = vmatmul.bf16.gmra.mxu0 %v2040
      %v2115 = vpop.f32.mrf.mxu0
      %v2116 = vadd.f32 0.0, %v2115
      %v2117 = vpop.f32.mrf.mxu0
      %v2118 = vadd.f32 0.0, %v2117
      %2119 = vmatmul.bf16.gmra.mxu0 %v2043
      %v2120 = vpop.f32.mrf.mxu0
      %v2121 = vadd.f32 0.0, %v2120
      %v2122 = vpop.f32.mrf.mxu0
      %v2123 = vadd.f32 0.0, %v2122
      %2124 = vmatmul.bf16.gmra.mxu0 %v2046
      %v2125 = vpop.f32.mrf.mxu0
      %v2126 = vadd.f32 0.0, %v2125
      %v2127 = vpop.f32.mrf.mxu0
      %v2128 = vadd.f32 0.0, %v2127
      %2129 = vmatmul.bf16.gmra.mxu0 %v2049
      %v2130 = vpop.f32.mrf.mxu0
      %v2131 = vadd.f32 0.0, %v2130
      %v2132 = vpop.f32.mrf.mxu0
      %v2133 = vadd.f32 0.0, %v2132
      %2134 = vmatmul.bf16.gmra.mxu0 %v2052
      %v2135 = vpop.f32.mrf.mxu0
      %v2136 = vadd.f32 0.0, %v2135
      %v2137 = vpop.f32.mrf.mxu0
      %v2138 = vadd.f32 0.0, %v2137
      %2139 = vmatmul.bf16.gmra.mxu0 %v2055
      %v2140 = vpop.f32.mrf.mxu0
      %v2141 = vadd.f32 0.0, %v2140
      %v2142 = vpop.f32.mrf.mxu0
      %v2143 = vadd.f32 0.0, %v2142
      %2144 = vmatmul.bf16.gmra.mxu0 %v2058
      %v2145 = vpop.f32.mrf.mxu0
      %v2146 = vadd.f32 0.0, %v2145
      %v2147 = vpop.f32.mrf.mxu0
      %v2148 = vadd.f32 0.0, %v2147
      %2149 = vmatmul.bf16.gmra.mxu0 %v2061
      %v2150 = vpop.f32.mrf.mxu0
      %v2151 = vadd.f32 0.0, %v2150
      %v2152 = vpop.f32.mrf.mxu0
      %v2153 = vadd.f32 0.0, %v2152
      %2154 = vdwg.mxu0
      %v2155 = vunpack.c.l.b16 %v1844
      %v2156 = vunpack.c.l.b16 %v1847
      %v2157 = vpack.c.b16 %v2156, %v2155
      %v2159 = vsel %vm320, %v2157, 0
      %v2162 = vsel %vm369, %v1954, 0
      %2164 = vmatpush.bf16.msra.mxu0 0
      %2165 = vmatpush.bf16.msra.mxu0 0
      %2166 = vmatpush.bf16.msra.mxu0 0
      %2167 = vmatpush.bf16.msra.mxu0 0
      %2168 = vmatpush.bf16.msra.mxu0 0
      %2169 = vmatpush.bf16.msra.mxu0 0
      %2170 = vmatpush.bf16.msra.mxu0 0
      %2171 = vmatpush.bf16.msra.mxu0 %v2162
      %2172 = vmatmul.bf16.gmra.mxu0 %v2159
      %v2173 = vpop.f32.mrf.mxu0
      %v2174 = vadd.f32 %v2076, %v2173
      %v2175 = vpop.f32.mrf.mxu0
      %v2176 = vadd.f32 %v2078, %v2175
      %2177 = vmatmul.bf16.gmra.mxu0 %v2016
      %v2178 = vpop.f32.mrf.mxu0
      %v2179 = vadd.f32 %v2081, %v2178
      %v2180 = vpop.f32.mrf.mxu0
      %v2181 = vadd.f32 %v2083, %v2180
      %2182 = vmatmul.bf16.gmra.mxu0 %v2019
      %v2183 = vpop.f32.mrf.mxu0
      %v2184 = vadd.f32 %v2086, %v2183
      %v2185 = vpop.f32.mrf.mxu0
      %v2186 = vadd.f32 %v2088, %v2185
      %2187 = vmatmul.bf16.gmra.mxu0 %v2022
      %v2188 = vpop.f32.mrf.mxu0
      %v2189 = vadd.f32 %v2091, %v2188
      %v2190 = vpop.f32.mrf.mxu0
      %v2191 = vadd.f32 %v2093, %v2190
      %2192 = vmatmul.bf16.gmra.mxu0 %v2025
      %v2193 = vpop.f32.mrf.mxu0
      %v2194 = vadd.f32 %v2096, %v2193
      %v2195 = vpop.f32.mrf.mxu0
      %v2196 = vadd.f32 %v2098, %v2195
      %2197 = vmatmul.bf16.gmra.mxu0 %v2028
      %v2198 = vpop.f32.mrf.mxu0
      %v2199 = vadd.f32 %v2101, %v2198
      %v2200 = vpop.f32.mrf.mxu0
      %v2201 = vadd.f32 %v2103, %v2200
      %2202 = vmatmul.bf16.gmra.mxu0 %v2031
      %v2203 = vpop.f32.mrf.mxu0
      %v2204 = vadd.f32 %v2106, %v2203
      %v2205 = vpop.f32.mrf.mxu0
      %v2206 = vadd.f32 %v2108, %v2205
      %2207 = vmatmul.bf16.gmra.mxu0 %v2034
      %v2208 = vpop.f32.mrf.mxu0
      %v2209 = vadd.f32 %v2111, %v2208
      %v2210 = vpop.f32.mrf.mxu0
      %v2211 = vadd.f32 %v2113, %v2210
      %2212 = vmatmul.bf16.gmra.mxu0 %v2037
      %v2213 = vpop.f32.mrf.mxu0
      %v2214 = vadd.f32 %v2116, %v2213
      %v2215 = vpop.f32.mrf.mxu0
      %v2216 = vadd.f32 %v2118, %v2215
      %2217 = vmatmul.bf16.gmra.mxu0 %v2040
      %v2218 = vpop.f32.mrf.mxu0
      %v2219 = vadd.f32 %v2121, %v2218
      %v2220 = vpop.f32.mrf.mxu0
      %v2221 = vadd.f32 %v2123, %v2220
      %2222 = vmatmul.bf16.gmra.mxu0 %v2043
      %v2223 = vpop.f32.mrf.mxu0
      %v2224 = vadd.f32 %v2126, %v2223
      %v2225 = vpop.f32.mrf.mxu0
      %v2226 = vadd.f32 %v2128, %v2225
      %2227 = vmatmul.bf16.gmra.mxu0 %v2046
      %v2228 = vpop.f32.mrf.mxu0
      %v2229 = vadd.f32 %v2131, %v2228
      %v2230 = vpop.f32.mrf.mxu0
      %v2231 = vadd.f32 %v2133, %v2230
      %2232 = vmatmul.bf16.gmra.mxu0 %v2049
      %v2233 = vpop.f32.mrf.mxu0
      %v2234 = vadd.f32 %v2136, %v2233
      %v2235 = vpop.f32.mrf.mxu0
      %v2236 = vadd.f32 %v2138, %v2235
      %2237 = vmatmul.bf16.gmra.mxu0 %v2052
      %v2238 = vpop.f32.mrf.mxu0
      %v2239 = vadd.f32 %v2141, %v2238
      %v2240 = vpop.f32.mrf.mxu0
      %v2241 = vadd.f32 %v2143, %v2240
      %2242 = vmatmul.bf16.gmra.mxu0 %v2055
      %v2243 = vpop.f32.mrf.mxu0
      %v2244 = vadd.f32 %v2146, %v2243
      %v2245 = vpop.f32.mrf.mxu0
      %v2246 = vadd.f32 %v2148, %v2245
      %2247 = vmatmul.bf16.gmra.mxu0 %v2058
      %v2248 = vpop.f32.mrf.mxu0
      %v2249 = vadd.f32 %v2151, %v2248
      %v2250 = vpop.f32.mrf.mxu0
      %v2251 = vadd.f32 %v2153, %v2250
      %2252 = vdwg.mxu0
      %v2256 = vrot.slane %v1787, 5
      %v2257 = vrot.slane %v2256, 4
      %v2258 = vrot.slane %v1788, 5
      %v2259 = vsel %vm1840, %v2257, %v2258
      %v2260 = vrot.slane %v2258, 4
      %v2261 = vrot.slane %v1789, 5
      %v2262 = vsel %vm1840, %v2260, %v2261
      %s2263 = scalar_lea.vmem %s1, 16
      %v2264 = vld [vmem:[%s2263] sm:$0x3]
      %v2265 = vunpack.c.l.b16 %v2259
      %v2266 = vunpack.c.l.b16 %v2262
      %v2267 = vpack.c.b16 %v2266, %v2265
      %v2269 = vsel %vm320, %v2267, 0
      %v2272 = vsel %vm369, %v2264, 0
      %2274 = vmatpush.bf16.msra.mxu0 0
      %2275 = vmatpush.bf16.msra.mxu0 0
      %2276 = vmatpush.bf16.msra.mxu0 0
      %2277 = vmatpush.bf16.msra.mxu0 0
      %2278 = vmatpush.bf16.msra.mxu0 0
      %2279 = vmatpush.bf16.msra.mxu0 0
      %2280 = vmatpush.bf16.msra.mxu0 0
      %2281 = vmatpush.bf16.msra.mxu0 %v2272
      %2282 = vmatmul.bf16.gmra.mxu0 %v2019
      %v2283 = vpop.f32.mrf.mxu0
      %v2284 = vadd.f32 0.0, %v2283
      %v2285 = vpop.f32.mrf.mxu0
      %v2286 = vadd.f32 0.0, %v2285
      %2287 = vmatmul.bf16.gmra.mxu0 %v2022
      %v2288 = vpop.f32.mrf.mxu0
      %v2289 = vadd.f32 0.0, %v2288
      %v2290 = vpop.f32.mrf.mxu0
      %v2291 = vadd.f32 0.0, %v2290
      %2292 = vmatmul.bf16.gmra.mxu0 %v2025
      %v2293 = vpop.f32.mrf.mxu0
      %v2294 = vadd.f32 0.0, %v2293
      %v2295 = vpop.f32.mrf.mxu0
      %v2296 = vadd.f32 0.0, %v2295
      %2297 = vmatmul.bf16.gmra.mxu0 %v2028
      %v2298 = vpop.f32.mrf.mxu0
      %v2299 = vadd.f32 0.0, %v2298
      %v2300 = vpop.f32.mrf.mxu0
      %v2301 = vadd.f32 0.0, %v2300
      %2302 = vmatmul.bf16.gmra.mxu0 %v2031
      %v2303 = vpop.f32.mrf.mxu0
      %v2304 = vadd.f32 0.0, %v2303
      %v2305 = vpop.f32.mrf.mxu0
      %v2306 = vadd.f32 0.0, %v2305
      %2307 = vmatmul.bf16.gmra.mxu0 %v2034
      %v2308 = vpop.f32.mrf.mxu0
      %v2309 = vadd.f32 0.0, %v2308
      %v2310 = vpop.f32.mrf.mxu0
      %v2311 = vadd.f32 0.0, %v2310
      %2312 = vmatmul.bf16.gmra.mxu0 %v2037
      %v2313 = vpop.f32.mrf.mxu0
      %v2314 = vadd.f32 0.0, %v2313
      %v2315 = vpop.f32.mrf.mxu0
      %v2316 = vadd.f32 0.0, %v2315
      %2317 = vmatmul.bf16.gmra.mxu0 %v2040
      %v2318 = vpop.f32.mrf.mxu0
      %v2319 = vadd.f32 0.0, %v2318
      %v2320 = vpop.f32.mrf.mxu0
      %v2321 = vadd.f32 0.0, %v2320
      %2322 = vmatmul.bf16.gmra.mxu0 %v2043
      %v2323 = vpop.f32.mrf.mxu0
      %v2324 = vadd.f32 0.0, %v2323
      %v2325 = vpop.f32.mrf.mxu0
      %v2326 = vadd.f32 0.0, %v2325
      %2327 = vmatmul.bf16.gmra.mxu0 %v2046
      %v2328 = vpop.f32.mrf.mxu0
      %v2329 = vadd.f32 0.0, %v2328
      %v2330 = vpop.f32.mrf.mxu0
      %v2331 = vadd.f32 0.0, %v2330
      %2332 = vmatmul.bf16.gmra.mxu0 %v2049
      %v2333 = vpop.f32.mrf.mxu0
      %v2334 = vadd.f32 0.0, %v2333
      %v2335 = vpop.f32.mrf.mxu0
      %v2336 = vadd.f32 0.0, %v2335
      %2337 = vmatmul.bf16.gmra.mxu0 %v2052
      %v2338 = vpop.f32.mrf.mxu0
      %v2339 = vadd.f32 0.0, %v2338
      %v2340 = vpop.f32.mrf.mxu0
      %v2341 = vadd.f32 0.0, %v2340
      %2342 = vmatmul.bf16.gmra.mxu0 %v2055
      %v2343 = vpop.f32.mrf.mxu0
      %v2344 = vadd.f32 0.0, %v2343
      %v2345 = vpop.f32.mrf.mxu0
      %v2346 = vadd.f32 0.0, %v2345
      %2347 = vmatmul.bf16.gmra.mxu0 %v2058
      %v2348 = vpop.f32.mrf.mxu0
      %v2349 = vadd.f32 0.0, %v2348
      %v2350 = vpop.f32.mrf.mxu0
      %v2351 = vadd.f32 0.0, %v2350
      %2352 = vmatmul.bf16.gmra.mxu0 %v2061
      %v2353 = vpop.f32.mrf.mxu0
      %v2354 = vadd.f32 0.0, %v2353
      %v2355 = vpop.f32.mrf.mxu0
      %v2356 = vadd.f32 0.0, %v2355
      %2357 = vmatmul.bf16.gmra.mxu0 %v2269
      %v2358 = vpop.f32.mrf.mxu0
      %v2359 = vadd.f32 0.0, %v2358
      %v2360 = vpop.f32.mrf.mxu0
      %v2361 = vadd.f32 0.0, %v2360
      %2362 = vdwg.mxu0
      %v2363 = vadd.f32 %v2174, %v2284
      %v2364 = vadd.f32 %v2176, %v2286
      %v2365 = vadd.f32 %v2179, %v2289
      %v2366 = vadd.f32 %v2181, %v2291
      %v2367 = vadd.f32 %v2184, %v2294
      %v2368 = vadd.f32 %v2186, %v2296
      %v2369 = vadd.f32 %v2189, %v2299
      %v2370 = vadd.f32 %v2191, %v2301
      %v2371 = vadd.f32 %v2194, %v2304
      %v2372 = vadd.f32 %v2196, %v2306
      %v2373 = vadd.f32 %v2199, %v2309
      %v2374 = vadd.f32 %v2201, %v2311
      %v2375 = vadd.f32 %v2204, %v2314
      %v2376 = vadd.f32 %v2206, %v2316
      %v2377 = vadd.f32 %v2209, %v2319
      %v2378 = vadd.f32 %v2211, %v2321
      %v2379 = vadd.f32 %v2214, %v2324
      %v2380 = vadd.f32 %v2216, %v2326
      %v2381 = vadd.f32 %v2219, %v2329
      %v2382 = vadd.f32 %v2221, %v2331
      %v2383 = vadd.f32 %v2224, %v2334
      %v2384 = vadd.f32 %v2226, %v2336
      %v2385 = vadd.f32 %v2229, %v2339
      %v2386 = vadd.f32 %v2231, %v2341
      %v2387 = vadd.f32 %v2234, %v2344
      %v2388 = vadd.f32 %v2236, %v2346
      %v2389 = vadd.f32 %v2239, %v2349
      %v2390 = vadd.f32 %v2241, %v2351
      %v2391 = vadd.f32 %v2244, %v2354
      %v2392 = vadd.f32 %v2246, %v2356
      %v2393 = vadd.f32 %v2249, %v2359
      %v2394 = vadd.f32 %v2251, %v2361
      %v2395 = vld [vmem:[#allocation2] sm:$0xff]
      %v2396 = vld [vmem:[#allocation2 + $0x8] sm:$0xff]
      %v2397 = vld [vmem:[#allocation2 + $0x10] sm:$0xff]
      %v2398 = vld [vmem:[#allocation2 + $0x18] sm:$0xff]
      %v2399 = vld [vmem:[#allocation2 + $0x20] sm:$0xff]
      %v2400 = vld [vmem:[#allocation2 + $0x28] sm:$0xff]
      %v2401 = vld [vmem:[#allocation2 + $0x30] sm:$0xff]
      %v2402 = vld [vmem:[#allocation2 + $0x38] sm:$0xff]
      %v2403 = vld [vmem:[#allocation2 + $0x40] sm:$0xff]
      %v2404 = vld [vmem:[#allocation2 + $0x48] sm:$0xff]
      %v2405 = vld [vmem:[#allocation2 + $0x50] sm:$0xff]
      %v2406 = vld [vmem:[#allocation2 + $0x58] sm:$0xff]
      %v2407 = vld [vmem:[#allocation2 + $0x60] sm:$0xff]
      %v2408 = vld [vmem:[#allocation2 + $0x68] sm:$0xff]
      %v2409 = vld [vmem:[#allocation2 + $0x70] sm:$0xff]
      %v2410 = vld [vmem:[#allocation2 + $0x78] sm:$0xff]
      %v2411 = vld [vmem:[#allocation2 + $0x80] sm:$0xff]
      %v2412 = vld [vmem:[#allocation2 + $0x88] sm:$0xff]
      %v2413 = vld [vmem:[#allocation2 + $0x90] sm:$0xff]
      %v2414 = vld [vmem:[#allocation2 + $0x98] sm:$0xff]
      %v2415 = vld [vmem:[#allocation2 + $0xa0] sm:$0xff]
      %v2416 = vld [vmem:[#allocation2 + $0xa8] sm:$0xff]
      %v2417 = vld [vmem:[#allocation2 + $0xb0] sm:$0xff]
      %v2418 = vld [vmem:[#allocation2 + $0xb8] sm:$0xff]
      %v2419 = vld [vmem:[#allocation2 + $0xc0] sm:$0xff]
      %v2420 = vld [vmem:[#allocation2 + $0xc8] sm:$0xff]
      %v2421 = vld [vmem:[#allocation2 + $0xd0] sm:$0xff]
      %v2422 = vld [vmem:[#allocation2 + $0xd8] sm:$0xff]
      %v2423 = vld [vmem:[#allocation2 + $0xe0] sm:$0xff]
      %v2424 = vld [vmem:[#allocation2 + $0xe8] sm:$0xff]
      %v2425 = vld [vmem:[#allocation2 + $0xf0] sm:$0xff]
      %v2426 = vld [vmem:[#allocation2 + $0xf8] sm:$0xff]
      %v2427 = vadd.f32 %v2395, %v2363
      %v2428 = vadd.f32 %v2396, %v2364
      %v2429 = vadd.f32 %v2397, %v2365
      %v2430 = vadd.f32 %v2398, %v2366
      %v2431 = vadd.f32 %v2399, %v2367
      %v2432 = vadd.f32 %v2400, %v2368
      %v2433 = vadd.f32 %v2401, %v2369
      %v2434 = vadd.f32 %v2402, %v2370
      %v2435 = vadd.f32 %v2403, %v2371
      %v2436 = vadd.f32 %v2404, %v2372
      %v2437 = vadd.f32 %v2405, %v2373
      %v2438 = vadd.f32 %v2406, %v2374
      %v2439 = vadd.f32 %v2407, %v2375
      %v2440 = vadd.f32 %v2408, %v2376
      %v2441 = vadd.f32 %v2409, %v2377
      %v2442 = vadd.f32 %v2410, %v2378
      %v2443 = vadd.f32 %v2411, %v2379
      %v2444 = vadd.f32 %v2412, %v2380
      %v2445 = vadd.f32 %v2413, %v2381
      %v2446 = vadd.f32 %v2414, %v2382
      %v2447 = vadd.f32 %v2415, %v2383
      %v2448 = vadd.f32 %v2416, %v2384
      %v2449 = vadd.f32 %v2417, %v2385
      %v2450 = vadd.f32 %v2418, %v2386
      %v2451 = vadd.f32 %v2419, %v2387
      %v2452 = vadd.f32 %v2420, %v2388
      %v2453 = vadd.f32 %v2421, %v2389
      %v2454 = vadd.f32 %v2422, %v2390
      %v2455 = vadd.f32 %v2423, %v2391
      %v2456 = vadd.f32 %v2424, %v2392
      %v2457 = vadd.f32 %v2425, %v2393
      %v2458 = vadd.f32 %v2426, %v2394
      %2459 = vst.msk [vmem:[#allocation2] sm:$0xff] %vm696, %v2427
      %2460 = vst.msk [vmem:[#allocation2 + $0x8] sm:$0xff] %vm696, %v2428
      %2461 = vst.msk [vmem:[#allocation2 + $0x10] sm:$0xff] %vm696, %v2429
      %2462 = vst.msk [vmem:[#allocation2 + $0x18] sm:$0xff] %vm696, %v2430
      %2463 = vst.msk [vmem:[#allocation2 + $0x20] sm:$0xff] %vm696, %v2431
      %2464 = vst.msk [vmem:[#allocation2 + $0x28] sm:$0xff] %vm696, %v2432
      %2465 = vst.msk [vmem:[#allocation2 + $0x30] sm:$0xff] %vm696, %v2433
      %2466 = vst.msk [vmem:[#allocation2 + $0x38] sm:$0xff] %vm696, %v2434
      %2467 = vst.msk [vmem:[#allocation2 + $0x40] sm:$0xff] %vm696, %v2435
      %2468 = vst.msk [vmem:[#allocation2 + $0x48] sm:$0xff] %vm696, %v2436
      %2469 = vst.msk [vmem:[#allocation2 + $0x50] sm:$0xff] %vm696, %v2437
      %2470 = vst.msk [vmem:[#allocation2 + $0x58] sm:$0xff] %vm696, %v2438
      %2471 = vst.msk [vmem:[#allocation2 + $0x60] sm:$0xff] %vm696, %v2439
      %2472 = vst.msk [vmem:[#allocation2 + $0x68] sm:$0xff] %vm696, %v2440
      %2473 = vst.msk [vmem:[#allocation2 + $0x70] sm:$0xff] %vm696, %v2441
      %2474 = vst.msk [vmem:[#allocation2 + $0x78] sm:$0xff] %vm696, %v2442
      %2475 = vst.msk [vmem:[#allocation2 + $0x80] sm:$0xff] %vm696, %v2443
      %2476 = vst.msk [vmem:[#allocation2 + $0x88] sm:$0xff] %vm696, %v2444
      %2477 = vst.msk [vmem:[#allocation2 + $0x90] sm:$0xff] %vm696, %v2445
      %2478 = vst.msk [vmem:[#allocation2 + $0x98] sm:$0xff] %vm696, %v2446
      %2479 = vst.msk [vmem:[#allocation2 + $0xa0] sm:$0xff] %vm696, %v2447
      %2480 = vst.msk [vmem:[#allocation2 + $0xa8] sm:$0xff] %vm696, %v2448
      %2481 = vst.msk [vmem:[#allocation2 + $0xb0] sm:$0xff] %vm696, %v2449
      %2482 = vst.msk [vmem:[#allocation2 + $0xb8] sm:$0xff] %vm696, %v2450
      %2483 = vst.msk [vmem:[#allocation2 + $0xc0] sm:$0xff] %vm696, %v2451
      %2484 = vst.msk [vmem:[#allocation2 + $0xc8] sm:$0xff] %vm696, %v2452
      %2485 = vst.msk [vmem:[#allocation2 + $0xd0] sm:$0xff] %vm696, %v2453
      %2486 = vst.msk [vmem:[#allocation2 + $0xd8] sm:$0xff] %vm696, %v2454
      %2487 = vst.msk [vmem:[#allocation2 + $0xe0] sm:$0xff] %vm696, %v2455
      %2488 = vst.msk [vmem:[#allocation2 + $0xe8] sm:$0xff] %vm696, %v2456
      %2489 = vst.msk [vmem:[#allocation2 + $0xf0] sm:$0xff] %vm696, %v2457
      %2490 = vst.msk [vmem:[#allocation2 + $0xf8] sm:$0xff] %vm696, %v2458
      %v2491 = vld [vmem:[#allocation2] sm:$0xff]
      %v2492 = vld [vmem:[#allocation2 + $0x8] sm:$0xff]
      %v2493 = vld [vmem:[#allocation2 + $0x10] sm:$0xff]
      %v2494 = vld [vmem:[#allocation2 + $0x18] sm:$0xff]
      %v2495 = vld [vmem:[#allocation2 + $0x20] sm:$0xff]
      %v2496 = vld [vmem:[#allocation2 + $0x28] sm:$0xff]
      %v2497 = vld [vmem:[#allocation2 + $0x30] sm:$0xff]
      %v2498 = vld [vmem:[#allocation2 + $0x38] sm:$0xff]
      %v2499 = vld [vmem:[#allocation2 + $0x40] sm:$0xff]
      %v2500 = vld [vmem:[#allocation2 + $0x48] sm:$0xff]
      %v2501 = vld [vmem:[#allocation2 + $0x50] sm:$0xff]
      %v2502 = vld [vmem:[#allocation2 + $0x58] sm:$0xff]
      %v2503 = vld [vmem:[#allocation2 + $0x60] sm:$0xff]
      %v2504 = vld [vmem:[#allocation2 + $0x68] sm:$0xff]
      %v2505 = vld [vmem:[#allocation2 + $0x70] sm:$0xff]
      %v2506 = vld [vmem:[#allocation2 + $0x78] sm:$0xff]
      %v2507 = vld [vmem:[#allocation2 + $0x80] sm:$0xff]
      %v2508 = vld [vmem:[#allocation2 + $0x88] sm:$0xff]
      %v2509 = vld [vmem:[#allocation2 + $0x90] sm:$0xff]
      %v2510 = vld [vmem:[#allocation2 + $0x98] sm:$0xff]
      %v2511 = vld [vmem:[#allocation2 + $0xa0] sm:$0xff]
      %v2512 = vld [vmem:[#allocation2 + $0xa8] sm:$0xff]
      %v2513 = vld [vmem:[#allocation2 + $0xb0] sm:$0xff]
      %v2514 = vld [vmem:[#allocation2 + $0xb8] sm:$0xff]
      %v2515 = vld [vmem:[#allocation2 + $0xc0] sm:$0xff]
      %v2516 = vld [vmem:[#allocation2 + $0xc8] sm:$0xff]
      %v2517 = vld [vmem:[#allocation2 + $0xd0] sm:$0xff]
      %v2518 = vld [vmem:[#allocation2 + $0xd8] sm:$0xff]
      %v2519 = vld [vmem:[#allocation2 + $0xe0] sm:$0xff]
      %v2520 = vld [vmem:[#allocation2 + $0xe8] sm:$0xff]
      %v2521 = vld [vmem:[#allocation2 + $0xf0] sm:$0xff]
      %v2522 = vld [vmem:[#allocation2 + $0xf8] sm:$0xff]
      %v2523 = vld [vmem:[%s2] sm:$0x1]
      %v2525 = vperm.slane %v2523, 0
      %v2527 = vadd.f32 %v2491, %v2525
      %v2528 = vadd.f32 %v2492, %v2525
      %v2529 = vadd.f32 %v2493, %v2525
      %v2530 = vadd.f32 %v2494, %v2525
      %v2531 = vadd.f32 %v2495, %v2525
      %v2532 = vadd.f32 %v2496, %v2525
      %v2533 = vadd.f32 %v2497, %v2525
      %v2534 = vadd.f32 %v2498, %v2525
      %v2535 = vadd.f32 %v2499, %v2525
      %v2536 = vadd.f32 %v2500, %v2525
      %v2537 = vadd.f32 %v2501, %v2525
      %v2538 = vadd.f32 %v2502, %v2525
      %v2539 = vadd.f32 %v2503, %v2525
      %v2540 = vadd.f32 %v2504, %v2525
      %v2541 = vadd.f32 %v2505, %v2525
      %v2542 = vadd.f32 %v2506, %v2525
      %v2543 = vadd.f32 %v2507, %v2525
      %v2544 = vadd.f32 %v2508, %v2525
      %v2545 = vadd.f32 %v2509, %v2525
      %v2546 = vadd.f32 %v2510, %v2525
      %v2547 = vadd.f32 %v2511, %v2525
      %v2548 = vadd.f32 %v2512, %v2525
      %v2549 = vadd.f32 %v2513, %v2525
      %v2550 = vadd.f32 %v2514, %v2525
      %v2551 = vadd.f32 %v2515, %v2525
      %v2552 = vadd.f32 %v2516, %v2525
      %v2553 = vadd.f32 %v2517, %v2525
      %v2554 = vadd.f32 %v2518, %v2525
      %v2555 = vadd.f32 %v2519, %v2525
      %v2556 = vadd.f32 %v2520, %v2525
      %v2557 = vadd.f32 %v2521, %v2525
      %v2558 = vadd.f32 %v2522, %v2525
      %v2559 = vmax.f32 %v2527, 0.0
      %v2560 = vmax.f32 %v2528, 0.0
      %v2561 = vmax.f32 %v2529, 0.0
      %v2562 = vmax.f32 %v2530, 0.0
      %v2563 = vmax.f32 %v2531, 0.0
      %v2564 = vmax.f32 %v2532, 0.0
      %v2565 = vmax.f32 %v2533, 0.0
      %v2566 = vmax.f32 %v2534, 0.0
      %v2567 = vmax.f32 %v2535, 0.0
      %v2568 = vmax.f32 %v2536, 0.0
      %v2569 = vmax.f32 %v2537, 0.0
      %v2570 = vmax.f32 %v2538, 0.0
      %v2571 = vmax.f32 %v2539, 0.0
      %v2572 = vmax.f32 %v2540, 0.0
      %v2573 = vmax.f32 %v2541, 0.0
      %v2574 = vmax.f32 %v2542, 0.0
      %v2575 = vmax.f32 %v2543, 0.0
      %v2576 = vmax.f32 %v2544, 0.0
      %v2577 = vmax.f32 %v2545, 0.0
      %v2578 = vmax.f32 %v2546, 0.0
      %v2579 = vmax.f32 %v2547, 0.0
      %v2580 = vmax.f32 %v2548, 0.0
      %v2581 = vmax.f32 %v2549, 0.0
      %v2582 = vmax.f32 %v2550, 0.0
      %v2583 = vmax.f32 %v2551, 0.0
      %v2584 = vmax.f32 %v2552, 0.0
      %v2585 = vmax.f32 %v2553, 0.0
      %v2586 = vmax.f32 %v2554, 0.0
      %v2587 = vmax.f32 %v2555, 0.0
      %v2588 = vmax.f32 %v2556, 0.0
      %v2589 = vmax.f32 %v2557, 0.0
      %v2590 = vmax.f32 %v2558, 0.0
      %2591 = vst.msk [vmem:[%s194] sm:$0xff] %vm696, %v2559
      %2592 = vst.msk [vmem:[%s194 + $0x8] sm:$0xff] %vm696, %v2560
      %2593 = vst.msk [vmem:[%s194 + $0x10] sm:$0xff] %vm696, %v2561
      %2594 = vst.msk [vmem:[%s194 + $0x18] sm:$0xff] %vm696, %v2562
      %2595 = vst.msk [vmem:[%s194 + $0x20] sm:$0xff] %vm696, %v2563
      %2596 = vst.msk [vmem:[%s194 + $0x28] sm:$0xff] %vm696, %v2564
      %2597 = vst.msk [vmem:[%s194 + $0x30] sm:$0xff] %vm696, %v2565
      %2598 = vst.msk [vmem:[%s194 + $0x38] sm:$0xff] %vm696, %v2566
      %2599 = vst.msk [vmem:[%s194 + $0x40] sm:$0xff] %vm696, %v2567
      %2600 = vst.msk [vmem:[%s194 + $0x48] sm:$0xff] %vm696, %v2568
      %2601 = vst.msk [vmem:[%s194 + $0x50] sm:$0xff] %vm696, %v2569
      %2602 = vst.msk [vmem:[%s194 + $0x58] sm:$0xff] %vm696, %v2570
      %2603 = vst.msk [vmem:[%s194 + $0x60] sm:$0xff] %vm696, %v2571
      %2604 = vst.msk [vmem:[%s194 + $0x68] sm:$0xff] %vm696, %v2572
      %2605 = vst.msk [vmem:[%s194 + $0x70] sm:$0xff] %vm696, %v2573
      %2606 = vst.msk [vmem:[%s194 + $0x78] sm:$0xff] %vm696, %v2574
      %2607 = vst.msk [vmem:[%s194 + $0x80] sm:$0xff] %vm696, %v2575
      %2608 = vst.msk [vmem:[%s194 + $0x88] sm:$0xff] %vm696, %v2576
      %2609 = vst.msk [vmem:[%s194 + $0x90] sm:$0xff] %vm696, %v2577
      %2610 = vst.msk [vmem:[%s194 + $0x98] sm:$0xff] %vm696, %v2578
      %2611 = vst.msk [vmem:[%s194 + $0xa0] sm:$0xff] %vm696, %v2579
      %2612 = vst.msk [vmem:[%s194 + $0xa8] sm:$0xff] %vm696, %v2580
      %2613 = vst.msk [vmem:[%s194 + $0xb0] sm:$0xff] %vm696, %v2581
      %2614 = vst.msk [vmem:[%s194 + $0xb8] sm:$0xff] %vm696, %v2582
      %2615 = vst.msk [vmem:[%s194 + $0xc0] sm:$0xff] %vm696, %v2583
      %2616 = vst.msk [vmem:[%s194 + $0xc8] sm:$0xff] %vm696, %v2584
      %2617 = vst.msk [vmem:[%s194 + $0xd0] sm:$0xff] %vm696, %v2585
      %2618 = vst.msk [vmem:[%s194 + $0xd8] sm:$0xff] %vm696, %v2586
      %2619 = vst.msk [vmem:[%s194 + $0xe0] sm:$0xff] %vm696, %v2587
      %2620 = vst.msk [vmem:[%s194 + $0xe8] sm:$0xff] %vm696, %v2588
      %2621 = vst.msk [vmem:[%s194 + $0xf0] sm:$0xff] %vm696, %v2589
      %2622 = vst.msk [vmem:[%s194 + $0xf8] sm:$0xff] %vm696, %v2590
      %s2623 = smul.u32 16, %s19
      %p2624 = scmp.lt.s32.totalorder %s18, 1
      %s2625 = scalar_select %p2624, %s18, 1
      %p2626 = scmp.lt.s32.totalorder %s2623, 15
      %s2627 = scalar_select %p2626, %s2623, 15
      %s2628 = smul.addr %s2627, 2
      %s2629 = smul.addr %s2625, 32
      %s2630 = sadd.s32 %s2628, %s2629
      %s2631 = smul.addr %s2630, 8
      %s2632 = scalar_lea.vmem %s3, %s2631
      // Predicated region
      $region33: #{inception_forward.1} parent=31 // pred_check
        %p2633 = pneg %p114
      $region34: #{inception_forward.1} parent=31 // pred_check_branch
        %2635 = sbr.rel (%p2633) target = $region36
      $region35: #{inception_forward.1} parent=31 // pred_region
        %s2636 = smul.u32 16, %s19
      $region36: #{inception_forward.1} parent=31 // pred_fallthru
        _
    $region32: #{inception_forward.1} parent=5 // pred_fallthru
      _
    %p2637 = scmp.le.s32.totalorder 2, %s9
    // Predicated region
    $region37: #{inception_forward.1} parent=5 // pred_check
      %p2638 = pneg %p2637
    $region38: #{inception_forward.1} parent=5 // pred_check_branch
      %2640 = sbr.rel (%p2638) target = $region40
    $region39: #{inception_forward.1} parent=5 // pred_region
      %s2641 = ssub.s32 %s9, 2
      // Predicated region
      $region41: #{inception_forward.1} parent=39 // pred_check
        %p2642 = pneg %p120
      $region42: #{inception_forward.1} parent=39 // pred_check_branch
        %2644 = sbr.rel (%p2642) target = $region44
      $region43: #{inception_forward.1} parent=39 // pred_region
        %s2645 = smul.u32 16, %s21
        %p2646 = scmp.lt.s32.totalorder %s20, 1
        %s2647 = scalar_select %p2646, %s20, 1
        %p2648 = scmp.lt.s32.totalorder %s2645, 15
        %s2649 = scalar_select %p2648, %s2645, 15
        %s2650 = smul.addr %s2649, 2
        %s2651 = smul.addr %s2647, 32
        %s2652 = sadd.s32 %s2650, %s2651
        %s2653 = smul.addr %s2652, 8
        %s2654 = scalar_lea.vmem %s3, %s2653
      $region44: #{inception_forward.1} parent=39 // pred_fallthru
        _
    $region40: #{inception_forward.1} parent=5 // pred_fallthru
      _
  $region6: #{inception_forward.1} parent=0 // loop_footer
    %s13 = sadd.s32 1, %s9
  $region7: #{inception_forward.1} parent=0 // loop_footer_branch
    %8 = sbr.rel target = $region3
  $region8: #{inception_forward.1} parent=0 // loop_exit
    _

</llo_original>
